<compile_context>
chip_gen: v7x
topology: tpu7x:2x2x1
jax: 0.10.0
libtpu: 0.0.40
codegen_flags: <defaults>
</compile_context>

<pallas_src>
import functools

import jax
import jax.numpy as jnp
from jax import lax
from jax.experimental import pallas as pl
from jax.experimental.pallas import tpu as pltpu


_BN_EPS = 1e-5
_INV_SQRT2 = 0.7071067811865475


def _round_up(a, b):
    return (a + b - 1) // b * b


def _round_down_min(a, b):
    return max(b, a // b * b)


@functools.lru_cache(maxsize=None)
def _vmem_limit_bytes():
    """Generation-aware VMEM budget: ~3/4 of physical VMEM, capped at 100 MiB.

    v5e/v6e (128 MiB physical) -> 96 MiB; v7x (64 MiB physical) -> 48 MiB.
    """
    try:
        cap = int(pltpu.get_tpu_info().vmem_capacity_bytes)
    except Exception:  # unknown chip / interpret mode
        cap = 64 * 1024 * 1024
    return min(cap * 3 // 4, 100 * 1024 * 1024)


def _pick_tiles(m, kp, cout, y_bytes):
    """Choose (TM, Mp, TN, Cp) subject to the generation-aware VMEM budget."""
    cp = _round_up(cout, 128)
    if cp <= 512:
        tn = cp
    else:
        cp = _round_up(cp, 512)
        tn = 512
    vmem = _vmem_limit_bytes()
    # Resident per grid step: 2 patch buffers + 2 output buffers scale with TM;
    # the weight block is single-buffered (constant across the inner M loop).
    per_row = 2 * kp * 2 + 2 * tn * y_bytes
    fixed = kp * tn * 2 + (2 << 20)              # weight block + slack
    budget = max(vmem - fixed, per_row * 256)
    tm_max = min(2048, _round_down_min(budget // per_row, 256))
    tm = min(tm_max, _round_up(m, 256))          # 256-aligned (MXU cadence, bf16 sublane pack)
    mp = _round_up(m, tm)
    return tm, mp, tn, cp


# ----------------------------- Pallas kernels ------------------------------

def _gemm_kernel(patches_ref, w_ref, o_ref):
    # patches: (TM, Kp) bf16, w: (Kp, TN) bf16 -> o: (TM, TN) f32
    o_ref[...] = jnp.dot(patches_ref[...], w_ref[...],
                         preferred_element_type=jnp.float32)


def _gemm_stats_kernel(patches_ref, w_ref, y_ref, stats_ref):
    # Pass 1 of the fused BN path: GEMM tile (stored bf16) + per-tile partial
    # (sum, sumsq).  Padded patch rows are exact zeros, so they contribute
    # nothing to the statistics -> no masking needed, no cross-tile accumulator
    # -> both grid axes stay "parallel" (megacore-friendly).
    y = jnp.dot(patches_ref[...], w_ref[...], preferred_element_type=jnp.float32)
    y_ref[...] = y.astype(y_ref.dtype)
    s = jnp.sum(y, axis=0, keepdims=True)          # (1, TN)
    sq = jnp.sum(y * y, axis=0, keepdims=True)     # (1, TN)
    stats_ref[...] = jnp.concatenate([s, sq], axis=0)[None, :, :]


def _bn_gelu_kernel(y_ref, scale_ref, shift_ref, o_ref):
    # Pass 2: fused affine normalize (scale/shift from batch stats) + exact GELU.
    z = y_ref[...].astype(jnp.float32) * scale_ref[...] + shift_ref[...]
    o_ref[...] = 0.5 * z * (1.0 + lax.erf(z * _INV_SQRT2))


# ------------------------------- JAX glue -----------------------------------

def _im2col(x, ksize, stride, padding, dilation):
    """x: (N, Cin, H, W) -> patches (N*Hout*Wout, Cin*KH*KW), plus Hout, Wout."""
    n, c, h, w = x.shape
    kh, kw = ksize
    sh, sw = stride
    ph, pw = padding
    dh, dw = dilation
    hout = (h + 2 * ph - dh * (kh - 1) - 1) // sh + 1
    wout = (w + 2 * pw - dw * (kw - 1) - 1) // sw + 1
    xp = jnp.pad(x, ((0, 0), (0, 0), (ph, ph), (pw, pw)))
    cols = []
    for ih in range(kh):
        for iw in range(kw):
            h0 = ih * dh
            w0 = iw * dw
            cols.append(xp[:, :, h0:h0 + sh * hout:sh, w0:w0 + sw * wout:sw])
    # (KH*KW, N, Cin, Hout, Wout) -> (N, Hout, Wout, Cin, KH*KW)
    cols = jnp.stack(cols, axis=0).transpose(1, 3, 4, 2, 0)
    patches = cols.reshape(n * hout * wout, c * kh * kw)
    return patches, hout, wout


@functools.partial(jax.jit, static_argnames=("ksize", "stride", "padding", "dilation", "bn_act"))
def conv_forward(x, weight, gamma, beta, *, ksize, stride, padding, dilation, bn_act):
    """Equivalent of Conv(nIn, nOut, kSize, stride, padding, dilation, groups=1, bn_act, bias=False).

    x:      (N, Cin, H, W)   NCHW, like PyTorch
    weight: (Cout, Cin, KH, KW)
    gamma, beta: (Cout,)  BatchNorm affine params (used only when bn_act=True)
    returns (N, Cout, Hout, Wout)  float32
    """
    n = x.shape[0]
    cout, cin, kh, kw = weight.shape

    # im2col on bf16 activations (halves the bytes of the materialized patch array).
    patches, hout, wout = _im2col(x.astype(jnp.bfloat16), (kh, kw), stride, padding, dilation)
    m, k = patches.shape

    kp = _round_up(k, 128)
    y_bytes = 2 if bn_act else 4                     # bf16 intermediate in the BN path
    tm, mp, tn, cp = _pick_tiles(m, kp, cout, y_bytes)
    gi = mp // tm                                    # M tiles (inner grid axis)
    gj = cp // tn                                    # Cout tiles (outer grid axis)
    grid = (gj, gi)
    vmem_limit = _vmem_limit_bytes()

    # Single pad to the GEMM-aligned shape (fuses into the im2col fusion under XLA).
    patches_p = jnp.pad(patches, ((0, mp - m), (0, kp - k)))                       # (Mp, Kp) bf16
    w_p = jnp.pad(weight.reshape(cout, cin * kh * kw).T.astype(jnp.bfloat16),
                  ((0, kp - k), (0, cp - cout)))                                   # (Kp, Cp) bf16

    patches_spec = pl.BlockSpec((tm, kp), lambda j, i: (i, 0))
    # Weight block is constant across the inner M loop -> single-buffer it.
    weight_spec = pl.BlockSpec((kp, tn), lambda j, i: (0, j),
                               pipeline_mode=pl.Buffered(1))
    y_spec = pl.BlockSpec((tm, tn), lambda j, i: (i, j))

    gemm_cost = pl.CostEstimate(
        flops=2 * mp * kp * cp,
        transcendentals=0,
        bytes_accessed=gj * mp * kp * 2 + kp * cp * 2 + mp * cp * y_bytes + gi * 2 * cp * 4,
    )

    if not bn_act:
        y = pl.pallas_call(
            _gemm_kernel,
            out_shape=jax.ShapeDtypeStruct((mp, cp), jnp.float32),
            grid_spec=pltpu.PrefetchScalarGridSpec(
                num_scalar_prefetch=0,
                grid=grid,
                in_specs=[patches_spec, weight_spec],
                out_specs=y_spec,
            ),
            compiler_params=pltpu.CompilerParams(
                dimension_semantics=("parallel", "parallel"),
                vmem_limit_bytes=vmem_limit,
            ),
            cost_estimate=gemm_cost,
        )(patches_p, w_p)
        y = y[:m, :cout]
        return y.reshape(n, hout, wout, cout).transpose(0, 3, 1, 2)

    # ---- fused BN (training-mode batch stats) + GELU ----
    gamma_p = jnp.pad(gamma.astype(jnp.float32), (0, cp - cout))
    beta_p = jnp.pad(beta.astype(jnp.float32), (0, cp - cout))

    # Pass 1: GEMM (bf16 out) + per-tile partial (sum, sumsq); fully parallel grid.
    y_gemm, stats = pl.pallas_call(
        _gemm_stats_kernel,
        out_shape=(jax.ShapeDtypeStruct((mp, cp), jnp.bfloat16),
                   jax.ShapeDtypeStruct((gi, 2, cp), jnp.float32)),
        grid_spec=pltpu.PrefetchScalarGridSpec(
            num_scalar_prefetch=0,
            grid=grid,
            in_specs=[patches_spec, weight_spec],
            out_specs=[y_spec,
                       pl.BlockSpec((1, 2, tn), lambda j, i: (i, 0, j))],
        ),
        compiler_params=pltpu.CompilerParams(
            dimension_semantics=("parallel", "parallel"),   # no cross-tile accumulator
            vmem_limit_bytes=vmem_limit,
        ),
        cost_estimate=gemm_cost,
    )(patches_p, w_p)

    # Finalize batch statistics (tiny (gi, Cp) math) and fold gamma/beta into scale/shift.
    sums = jnp.sum(stats[:, 0, :], axis=0)
    sqs = jnp.sum(stats[:, 1, :], axis=0)
    mean = sums / float(m)
    var = jnp.maximum(sqs / float(m) - mean * mean, 0.0)
    rstd = lax.rsqrt(var + _BN_EPS)
    scale_v = gamma_p * rstd
    shift_v = beta_p - mean * scale_v
    scale = scale_v.reshape(1, cp)
    shift = shift_v.reshape(1, cp)

    # Pass 2: normalize + exact GELU; bf16 intermediate read, lane-dense f32 write.
    out_flat = pl.pallas_call(
        _bn_gelu_kernel,
        out_shape=jax.ShapeDtypeStruct((mp, cp), jnp.float32),
        grid_spec=pltpu.PrefetchScalarGridSpec(
            num_scalar_prefetch=0,
            grid=grid,
            in_specs=[y_spec,
                      pl.BlockSpec((1, tn), lambda j, i: (0, j),
                                   pipeline_mode=pl.Buffered(1)),
                      pl.BlockSpec((1, tn), lambda j, i: (0, j),
                                   pipeline_mode=pl.Buffered(1))],
            out_specs=pl.BlockSpec((tm, tn), lambda j, i: (i, j)),
        ),
        compiler_params=pltpu.CompilerParams(
            dimension_semantics=("parallel", "parallel"),
            vmem_limit_bytes=vmem_limit,
        ),
        cost_estimate=pl.CostEstimate(
            flops=8 * mp * cp,
            transcendentals=mp * cp,
            bytes_accessed=mp * cp * 2 + mp * cp * 4 + 2 * cp * 4,
        ),
    )(y_gemm, scale, shift)

    out_flat = out_flat[:m, :cout]
    # NCHW only at the module boundary (network would ideally stay NHWC end-to-end).
    return out_flat.reshape(n, hout, wout, cout).transpose(0, 3, 1, 2)


# ------------------------------ reference -----------------------------------

def _reference(x, weight, gamma, beta, *, stride, padding, dilation, bn_act):
    # bf16 conv operands with f32 accumulation, to match the kernel's MXU precision choice.
    y = lax.conv_general_dilated(
        x.astype(jnp.bfloat16), weight.astype(jnp.bfloat16),
        window_strides=stride,
        padding=[(padding[0], padding[0]), (padding[1], padding[1])],
        rhs_dilation=dilation,
        dimension_numbers=("NCHW", "OIHW", "NCHW"),
        preferred_element_type=jnp.float32,
    )
    if bn_act:
        mean = jnp.mean(y, axis=(0, 2, 3), keepdims=True)
        var = jnp.mean((y - mean) ** 2, axis=(0, 2, 3), keepdims=True)
        y = (y - mean) * lax.rsqrt(var + _BN_EPS)
        y = y * gamma.reshape(1, -1, 1, 1) + beta.reshape(1, -1, 1, 1)
        y = 0.5 * y * (1.0 + lax.erf(y / jnp.sqrt(2.0)))
    return y


# --------------------------------- main --------------------------------------

if __name__ == "__main__":
    # Module config: Conv(nIn=4, nOut=8, kSize=3, stride=1, padding=1, dilation=(1,1),
    #                     groups=1, bn_act=True, bias=False)
    N, C_IN, H, W = 2, 4, 16, 16
    C_OUT, K = 8, 3
    STRIDE, PAD, DIL = (1, 1), (1, 1), (1, 1)

    key = jax.random.PRNGKey(0)
    kx, kw_, kg, kb = jax.random.split(key, 4)
    x = jax.random.normal(kx, (N, C_IN, H, W), dtype=jnp.float32)
    weight = jax.random.normal(kw_, (C_OUT, C_IN, K, K), dtype=jnp.float32) * 0.1
    gamma = 1.0 + 0.1 * jax.random.normal(kg, (C_OUT,), dtype=jnp.float32)
    beta = 0.1 * jax.random.normal(kb, (C_OUT,), dtype=jnp.float32)

    # Fused Conv + BN + GELU path.  (Tolerance accounts for the bf16 GEMM intermediate.)
    out = conv_forward(
        x, weight, gamma, beta,
        ksize=(K, K), stride=STRIDE, padding=PAD, dilation=DIL, bn_act=True,
    )
    out = jax.block_until_ready(out)
    ref = _reference(x, weight, gamma, beta,
                     stride=STRIDE, padding=PAD, dilation=DIL, bn_act=True)
    assert out.shape == (N, C_OUT, H, W), out.shape
    assert jnp.allclose(out, ref, atol=5e-3, rtol=5e-3), float(jnp.max(jnp.abs(out - ref)))

    # Plain conv path (bn_act=False).
    out2 = jax.block_until_ready(
        conv_forward(x, weight, gamma, beta,
                     ksize=(K, K), stride=STRIDE, padding=PAD, dilation=DIL, bn_act=False)
    )
    ref2 = _reference(x, weight, gamma, beta,
                      stride=STRIDE, padding=PAD, dilation=DIL, bn_act=False)
    assert out2.shape == (N, C_OUT, H, W), out2.shape
    assert jnp.allclose(out2, ref2, atol=2e-3, rtol=2e-3), float(jnp.max(jnp.abs(out2 - ref2)))

    print("KERNEL_OK")
</pallas_src>

<mosaic_0001>
module attributes {stable_mosaic.version = 11 : i64} {
  func.func @_bn_gelu_kernel(%arg0: i32, %arg1: i32, %arg2: memref<512x128xbf16, #tpu.memory_space<vmem>>, %arg3: memref<1x128xf32, #tpu.memory_space<vmem>>, %arg4: memref<1x128xf32, #tpu.memory_space<vmem>>, %arg5: memref<512x128xf32, #tpu.memory_space<vmem>>) attributes {dimension_semantics = [#tpu.dimension_semantics<parallel>, #tpu.dimension_semantics<parallel>], iteration_bounds = array<i64: 1, 1>, scalar_prefetch = 0 : i64, scratch_operands = 0 : i64, tpu.core_type = #tpu.core_type<tc>, window_params = [{transform_indices = @transform_0, window_bounds = array<i64: 512, 128>}, {pipeline_mode = #tpu.pipeline_mode<synchronous>, transform_indices = @transform_1, window_bounds = array<i64: 1, 128>}, {pipeline_mode = #tpu.pipeline_mode<synchronous>, transform_indices = @transform_2, window_bounds = array<i64: 1, 128>}, {transform_indices = @transform_3, window_bounds = array<i64: 512, 128>}]} {
    %c0 = arith.constant 0 : index
    %c0_0 = arith.constant 0 : index
    %0 = vector.load %arg2[%c0, %c0_0] : memref<512x128xbf16, #tpu.memory_space<vmem>>, vector<512x128xbf16>
    %1 = arith.extf %0 : vector<512x128xbf16> to vector<512x128xf32>
    %c0_1 = arith.constant 0 : index
    %c0_2 = arith.constant 0 : index
    %2 = vector.load %arg3[%c0_1, %c0_2] : memref<1x128xf32, #tpu.memory_space<vmem>>, vector<1x128xf32>
    %3 = vector.broadcast %2 : vector<1x128xf32> to vector<512x128xf32>
    %4 = arith.mulf %1, %3 : vector<512x128xf32>
    %c0_3 = arith.constant 0 : index
    %c0_4 = arith.constant 0 : index
    %5 = vector.load %arg4[%c0_3, %c0_4] : memref<1x128xf32, #tpu.memory_space<vmem>>, vector<1x128xf32>
    %6 = vector.broadcast %5 : vector<1x128xf32> to vector<512x128xf32>
    %7 = arith.addf %4, %6 : vector<512x128xf32>
    %cst = arith.constant 5.000000e-01 : f32
    %8 = vector.broadcast %cst : f32 to vector<512x128xf32>
    %9 = arith.mulf %8, %7 : vector<512x128xf32>
    %cst_5 = arith.constant 0.707106769 : f32
    %10 = vector.broadcast %cst_5 : f32 to vector<512x128xf32>
    %11 = arith.mulf %7, %10 : vector<512x128xf32>
    %12 = math.erf %11 : vector<512x128xf32>
    %cst_6 = arith.constant 1.000000e+00 : f32
    %13 = vector.broadcast %cst_6 : f32 to vector<512x128xf32>
    %14 = arith.addf %13, %12 : vector<512x128xf32>
    %15 = arith.mulf %9, %14 : vector<512x128xf32>
    %c0_7 = arith.constant 0 : index
    %c0_8 = arith.constant 0 : index
    %16 = vector.load %arg5[%c0_7, %c0_8] : memref<512x128xf32, #tpu.memory_space<vmem>>, vector<512x128xf32>
    tpu.vector_store %arg5[%c0_7, %c0_8], %15 {strides = array<i32>} : memref<512x128xf32, #tpu.memory_space<vmem>>, vector<512x128xf32>,
    return
  }
  func.func @transform_0(%arg0: i32, %arg1: i32) -> (i32, i32) {
    %c0_i32 = arith.constant 0 : i32
    return %arg1, %arg0 : i32, i32
  }
  func.func @transform_1(%arg0: i32, %arg1: i32) -> (i32, i32) {
    %c0_i32 = arith.constant 0 : i32
    %c0_i32_0 = arith.constant 0 : i32
    return %c0_i32, %arg0 : i32, i32
  }
  func.func @transform_2(%arg0: i32, %arg1: i32) -> (i32, i32) {
    %c0_i32 = arith.constant 0 : i32
    %c0_i32_0 = arith.constant 0 : i32
    return %c0_i32, %arg0 : i32, i32
  }
  func.func @transform_3(%arg0: i32, %arg1: i32) -> (i32, i32) {
    %c0_i32 = arith.constant 0 : i32
    return %arg1, %arg0 : i32, i32
  }
}

module attributes {stable_mosaic.version = 11 : i64} {
  func.func @_gemm_stats_kernel(%arg0: i32, %arg1: i32, %arg2: memref<512x128xbf16, #tpu.memory_space<vmem>>, %arg3: memref<128x128xbf16, #tpu.memory_space<vmem>>, %arg4: memref<512x128xbf16, #tpu.memory_space<vmem>>, %arg5: memref<1x2x128xf32, #tpu.memory_space<vmem>>) attributes {dimension_semantics = [#tpu.dimension_semantics<parallel>, #tpu.dimension_semantics<parallel>], iteration_bounds = array<i64: 1, 1>, scalar_prefetch = 0 : i64, scratch_operands = 0 : i64, tpu.core_type = #tpu.core_type<tc>, window_params = [{transform_indices = @transform_0, window_bounds = array<i64: 512, 128>}, {pipeline_mode = #tpu.pipeline_mode<synchronous>, transform_indices = @transform_1, window_bounds = array<i64: 128, 128>}, {transform_indices = @transform_2, window_bounds = array<i64: 512, 128>}, {transform_indices = @transform_3, window_bounds = array<i64: 1, 2, 128>}]} {
    %c0 = arith.constant 0 : index
    %c0_0 = arith.constant 0 : index
    %0 = vector.load %arg2[%c0, %c0_0] : memref<512x128xbf16, #tpu.memory_space<vmem>>, vector<512x128xbf16>
    %c0_1 = arith.constant 0 : index
    %c0_2 = arith.constant 0 : index
    %1 = vector.load %arg3[%c0_1, %c0_2] : memref<128x128xbf16, #tpu.memory_space<vmem>>, vector<128x128xbf16>
    %cst = arith.constant dense<0.000000e+00> : vector<512x128xf32>
    %2 = tpu.matmul %0, %1, %cst {dimension_numbers = #tpu.dot_dimension_numbers<[1], [0], [0], [1], [0, 0, 1, 1], [], []>} : vector<512x128xbf16>, vector<128x128xbf16>, vector<512x128xf32> -> vector<512x128xf32>
    %3 = arith.truncf %2 : vector<512x128xf32> to vector<512x128xbf16>
    %c0_3 = arith.constant 0 : index
    %c0_4 = arith.constant 0 : index
    %4 = vector.load %arg4[%c0_3, %c0_4] : memref<512x128xbf16, #tpu.memory_space<vmem>>, vector<512x128xbf16>
    tpu.vector_store %arg4[%c0_3, %c0_4], %3 {strides = array<i32>} : memref<512x128xbf16, #tpu.memory_space<vmem>>, vector<512x128xbf16>,
    %cst_5 = arith.constant dense<0.000000e+00> : vector<128xf32>
    %5 = vector.multi_reduction <add>, %2, %cst_5 [0] : vector<512x128xf32> to vector<128xf32>
    %6 = vector.shape_cast %5 : vector<128xf32> to vector<1x128xf32>
    %7 = arith.mulf %2, %2 : vector<512x128xf32>
    %cst_6 = arith.constant dense<0.000000e+00> : vector<128xf32>
    %8 = vector.multi_reduction <add>, %7, %cst_6 [0] : vector<512x128xf32> to vector<128xf32>
    %9 = vector.shape_cast %8 : vector<128xf32> to vector<1x128xf32>
    %10 = tpu.concatenate %6, %9 in 0 : vector<1x128xf32>, vector<1x128xf32> -> vector<2x128xf32>
    %11 = vector.shape_cast %10 : vector<2x128xf32> to vector<1x2x128xf32>
    %c0_7 = arith.constant 0 : index
    %c0_8 = arith.constant 0 : index
    %c0_9 = arith.constant 0 : index
    %12 = vector.load %arg5[%c0_7, %c0_8, %c0_9] : memref<1x2x128xf32, #tpu.memory_space<vmem>>, vector<1x2x128xf32>
    tpu.vector_store %arg5[%c0_7, %c0_8, %c0_9], %11 {strides = array<i32>} : memref<1x2x128xf32, #tpu.memory_space<vmem>>, vector<1x2x128xf32>,
    return
  }
  func.func @transform_0(%arg0: i32, %arg1: i32) -> (i32, i32) {
    %c0_i32 = arith.constant 0 : i32
    %c0_i32_0 = arith.constant 0 : i32
    return %arg1, %c0_i32 : i32, i32
  }
  func.func @transform_1(%arg0: i32, %arg1: i32) -> (i32, i32) {
    %c0_i32 = arith.constant 0 : i32
    %c0_i32_0 = arith.constant 0 : i32
    return %c0_i32, %arg0 : i32, i32
  }
  func.func @transform_2(%arg0: i32, %arg1: i32) -> (i32, i32) {
    %c0_i32 = arith.constant 0 : i32
    return %arg1, %arg0 : i32, i32
  }
  func.func @transform_3(%arg0: i32, %arg1: i32) -> (i32, i32, i32) {
    %c0_i32 = arith.constant 0 : i32
    %c0_i32_0 = arith.constant 0 : i32
    return %arg1, %c0_i32, %arg0 : i32, i32, i32
  }
}

</mosaic_0001>

<llo_original>
// kernel: conv_forward.3
$region0: #{conv_forward.3}
  #allocation0 [shape = 'u32[]', space=smem, size = 0x4, offset = 0x4, fixed_abs, tag = 'smem constant byte address 0x4 - core index']
  #allocation1 [shape = 'u32[144,128]{1,0:T(1,128)}', space=vmem, size = 0x12000, scoped, tag = 'internal scratch']
  %s0 = inlined_call_operand.vmem [shape: bf16[512,128], index: 0, kind: input, shape index: {}]
  %s1 = inlined_call_operand.vmem [shape: f32[1,128], index: 1, kind: input, shape index: {}]
  %s2 = inlined_call_operand.vmem [shape: f32[1,128], index: 2, kind: input, shape index: {}]
  %s3 = inlined_call_operand.vmem [shape: f32[512,128], index: 3, kind: output, shape index: {}]
  %s4 = sld [smem:[#allocation0]]
  $region22: #{conv_forward.3} parent=0
    _
  %s6 = ssub.s32 1, %s4
  %s7 = scalar_select 0, %s6, %s4
  // Predicated region
  $region2: #{conv_forward.3} parent=0 // pred_check
    _
  $region3: #{conv_forward.3} parent=0 // pred_check_branch
    %9 = sbr.rel (0) target = $region5
  $region4: #{conv_forward.3} parent=0 // pred_region
    _
  $region5: #{conv_forward.3} parent=0 // pred_fallthru
    _
  // Predicated region
  $region6: #{conv_forward.3} parent=0 // pred_check
    _
  $region7: #{conv_forward.3} parent=0 // pred_check_branch
    %11 = sbr.rel (0) target = $region9
  $region8: #{conv_forward.3} parent=0 // pred_region
    _
  $region9: #{conv_forward.3} parent=0 // pred_fallthru
    _
  // Predicated region
  $region10: #{conv_forward.3} parent=0 // pred_check
    _
  $region11: #{conv_forward.3} parent=0 // pred_check_branch
    %13 = sbr.rel (0) target = $region13
  $region12: #{conv_forward.3} parent=0 // pred_region
    _
  $region13: #{conv_forward.3} parent=0 // pred_fallthru
    _
  %v14 = vld [vmem:[%s0] sm:$0xf]
  %v15 = vld [vmem:[%s0 + $0x4] sm:$0xf]
  %v16 = vld [vmem:[%s0 + $0x8] sm:$0xf]
  %v17 = vld [vmem:[%s0 + $0xc] sm:$0xf]
  %v18 = vld [vmem:[%s0 + $0x10] sm:$0xf]
  %v19 = vld [vmem:[%s0 + $0x14] sm:$0xf]
  %v20 = vld [vmem:[%s0 + $0x18] sm:$0xf]
  %v21 = vld [vmem:[%s0 + $0x1c] sm:$0xf]
  %v22 = vld [vmem:[%s0 + $0x20] sm:$0xf]
  %v23 = vld [vmem:[%s0 + $0x24] sm:$0xf]
  %v24 = vld [vmem:[%s0 + $0x28] sm:$0xf]
  %v25 = vld [vmem:[%s0 + $0x2c] sm:$0xf]
  %v26 = vld [vmem:[%s0 + $0x30] sm:$0xf]
  %v27 = vld [vmem:[%s0 + $0x34] sm:$0xf]
  %v28 = vld [vmem:[%s0 + $0x38] sm:$0xf]
  %v29 = vld [vmem:[%s0 + $0x3c] sm:$0xf]
  %v30 = vld [vmem:[%s0 + $0x40] sm:$0xf]
  %v31 = vld [vmem:[%s0 + $0x44] sm:$0xf]
  %v32 = vld [vmem:[%s0 + $0x48] sm:$0xf]
  %v33 = vld [vmem:[%s0 + $0x4c] sm:$0xf]
  %v34 = vld [vmem:[%s0 + $0x50] sm:$0xf]
  %v35 = vld [vmem:[%s0 + $0x54] sm:$0xf]
  %v36 = vld [vmem:[%s0 + $0x58] sm:$0xf]
  %v37 = vld [vmem:[%s0 + $0x5c] sm:$0xf]
  %v38 = vld [vmem:[%s0 + $0x60] sm:$0xf]
  %v39 = vld [vmem:[%s0 + $0x64] sm:$0xf]
  %v40 = vld [vmem:[%s0 + $0x68] sm:$0xf]
  %v41 = vld [vmem:[%s0 + $0x6c] sm:$0xf]
  %v42 = vld [vmem:[%s0 + $0x70] sm:$0xf]
  %v43 = vld [vmem:[%s0 + $0x74] sm:$0xf]
  %v44 = vld [vmem:[%s0 + $0x78] sm:$0xf]
  %v45 = vld [vmem:[%s0 + $0x7c] sm:$0xf]
  %v46 = vld [vmem:[%s0 + $0x80] sm:$0xf]
  %v47 = vld [vmem:[%s0 + $0x84] sm:$0xf]
  %v48 = vld [vmem:[%s0 + $0x88] sm:$0xf]
  %v49 = vld [vmem:[%s0 + $0x8c] sm:$0xf]
  %v50 = vld [vmem:[%s0 + $0x90] sm:$0xf]
  %v51 = vld [vmem:[%s0 + $0x94] sm:$0xf]
  %v52 = vld [vmem:[%s0 + $0x98] sm:$0xf]
  %v53 = vld [vmem:[%s0 + $0x9c] sm:$0xf]
  %v54 = vld [vmem:[%s0 + $0xa0] sm:$0xf]
  %v55 = vld [vmem:[%s0 + $0xa4] sm:$0xf]
  %v56 = vld [vmem:[%s0 + $0xa8] sm:$0xf]
  %v57 = vld [vmem:[%s0 + $0xac] sm:$0xf]
  %v58 = vld [vmem:[%s0 + $0xb0] sm:$0xf]
  %v59 = vld [vmem:[%s0 + $0xb4] sm:$0xf]
  %v60 = vld [vmem:[%s0 + $0xb8] sm:$0xf]
  %v61 = vld [vmem:[%s0 + $0xbc] sm:$0xf]
  %v62 = vld [vmem:[%s0 + $0xc0] sm:$0xf]
  %v63 = vld [vmem:[%s0 + $0xc4] sm:$0xf]
  %v64 = vld [vmem:[%s0 + $0xc8] sm:$0xf]
  %v65 = vld [vmem:[%s0 + $0xcc] sm:$0xf]
  %v66 = vld [vmem:[%s0 + $0xd0] sm:$0xf]
  %v67 = vld [vmem:[%s0 + $0xd4] sm:$0xf]
  %v68 = vld [vmem:[%s0 + $0xd8] sm:$0xf]
  %v69 = vld [vmem:[%s0 + $0xdc] sm:$0xf]
  %v70 = vld [vmem:[%s0 + $0xe0] sm:$0xf]
  %v71 = vld [vmem:[%s0 + $0xe4] sm:$0xf]
  %v72 = vld [vmem:[%s0 + $0xe8] sm:$0xf]
  %v73 = vld [vmem:[%s0 + $0xec] sm:$0xf]
  %v74 = vld [vmem:[%s0 + $0xf0] sm:$0xf]
  %v75 = vld [vmem:[%s0 + $0xf4] sm:$0xf]
  %v76 = vld [vmem:[%s0 + $0xf8] sm:$0xf]
  %v77 = vld [vmem:[%s0 + $0xfc] sm:$0xf]
  %v78 = vunpack.c.l.bf16 %v14
  %v79 = vunpack.c.l.bf16 %v15
  %v80 = vunpack.c.l.bf16 %v16
  %v81 = vunpack.c.l.bf16 %v17
  %v82 = vunpack.c.l.bf16 %v18
  %v83 = vunpack.c.l.bf16 %v19
  %v84 = vunpack.c.l.bf16 %v20
  %v85 = vunpack.c.l.bf16 %v21
  %v86 = vunpack.c.l.bf16 %v22
  %v87 = vunpack.c.l.bf16 %v23
  %v88 = vunpack.c.l.bf16 %v24
  %v89 = vunpack.c.l.bf16 %v25
  %v90 = vunpack.c.l.bf16 %v26
  %v91 = vunpack.c.l.bf16 %v27
  %v92 = vunpack.c.l.bf16 %v28
  %v93 = vunpack.c.l.bf16 %v29
  %v94 = vunpack.c.l.bf16 %v30
  %v95 = vunpack.c.l.bf16 %v31
  %v96 = vunpack.c.l.bf16 %v32
  %v97 = vunpack.c.l.bf16 %v33
  %v98 = vunpack.c.l.bf16 %v34
  %v99 = vunpack.c.l.bf16 %v35
  %v100 = vunpack.c.l.bf16 %v36
  %v101 = vunpack.c.l.bf16 %v37
  %v102 = vunpack.c.l.bf16 %v38
  %v103 = vunpack.c.l.bf16 %v39
  %v104 = vunpack.c.l.bf16 %v40
  %v105 = vunpack.c.l.bf16 %v41
  %v106 = vunpack.c.l.bf16 %v42
  %v107 = vunpack.c.l.bf16 %v43
  %v108 = vunpack.c.l.bf16 %v44
  %v109 = vunpack.c.l.bf16 %v45
  %v110 = vunpack.c.l.bf16 %v46
  %v111 = vunpack.c.l.bf16 %v47
  %v112 = vunpack.c.l.bf16 %v48
  %v113 = vunpack.c.l.bf16 %v49
  %v114 = vunpack.c.l.bf16 %v50
  %v115 = vunpack.c.l.bf16 %v51
  %v116 = vunpack.c.l.bf16 %v52
  %v117 = vunpack.c.l.bf16 %v53
  %v118 = vunpack.c.l.bf16 %v54
  %v119 = vunpack.c.l.bf16 %v55
  %v120 = vunpack.c.l.bf16 %v56
  %v121 = vunpack.c.l.bf16 %v57
  %v122 = vunpack.c.l.bf16 %v58
  %v123 = vunpack.c.l.bf16 %v59
  %v124 = vunpack.c.l.bf16 %v60
  %v125 = vunpack.c.l.bf16 %v61
  %v126 = vunpack.c.l.bf16 %v62
  %v127 = vunpack.c.l.bf16 %v63
  %v128 = vunpack.c.l.bf16 %v64
  %v129 = vunpack.c.l.bf16 %v65
  %v130 = vunpack.c.l.bf16 %v66
  %v131 = vunpack.c.l.bf16 %v67
  %v132 = vunpack.c.l.bf16 %v68
  %v133 = vunpack.c.l.bf16 %v69
  %v134 = vunpack.c.l.bf16 %v70
  %v135 = vunpack.c.l.bf16 %v71
  %v136 = vunpack.c.l.bf16 %v72
  %v137 = vunpack.c.l.bf16 %v73
  %v138 = vunpack.c.l.bf16 %v74
  %v139 = vunpack.c.l.bf16 %v75
  %v140 = vunpack.c.l.bf16 %v76
  %v141 = vunpack.c.l.bf16 %v77
  %v142 = vld [vmem:[%s1] sm:$0x1]
  %v144 = vlaneseq
  %v145 = vshrl.u32 %v144, 7
  %v146 = vsub.s32 0, %v145
  %v147 = vrot.slane %v142, %v146
  %v149 = vmul.f32 %v78, %v147
  %v150 = vmul.f32 %v79, %v147
  %v151 = vmul.f32 %v80, %v147
  %v152 = vmul.f32 %v81, %v147
  %v153 = vmul.f32 %v82, %v147
  %v154 = vmul.f32 %v83, %v147
  %v155 = vmul.f32 %v84, %v147
  %v156 = vmul.f32 %v85, %v147
  %v157 = vmul.f32 %v86, %v147
  %v158 = vmul.f32 %v87, %v147
  %v159 = vmul.f32 %v88, %v147
  %v160 = vmul.f32 %v89, %v147
  %v161 = vmul.f32 %v90, %v147
  %v162 = vmul.f32 %v91, %v147
  %v163 = vmul.f32 %v92, %v147
  %v164 = vmul.f32 %v93, %v147
  %v165 = vmul.f32 %v94, %v147
  %v166 = vmul.f32 %v95, %v147
  %v167 = vmul.f32 %v96, %v147
  %v168 = vmul.f32 %v97, %v147
  %v169 = vmul.f32 %v98, %v147
  %v170 = vmul.f32 %v99, %v147
  %v171 = vmul.f32 %v100, %v147
  %v172 = vmul.f32 %v101, %v147
  %v173 = vmul.f32 %v102, %v147
  %v174 = vmul.f32 %v103, %v147
  %v175 = vmul.f32 %v104, %v147
  %v176 = vmul.f32 %v105, %v147
  %v177 = vmul.f32 %v106, %v147
  %v178 = vmul.f32 %v107, %v147
  %v179 = vmul.f32 %v108, %v147
  %v180 = vmul.f32 %v109, %v147
  %v181 = vmul.f32 %v110, %v147
  %v182 = vmul.f32 %v111, %v147
  %v183 = vmul.f32 %v112, %v147
  %v184 = vmul.f32 %v113, %v147
  %v185 = vmul.f32 %v114, %v147
  %v186 = vmul.f32 %v115, %v147
  %v187 = vmul.f32 %v116, %v147
  %v188 = vmul.f32 %v117, %v147
  %v189 = vmul.f32 %v118, %v147
  %v190 = vmul.f32 %v119, %v147
  %v191 = vmul.f32 %v120, %v147
  %v192 = vmul.f32 %v121, %v147
  %v193 = vmul.f32 %v122, %v147
  %v194 = vmul.f32 %v123, %v147
  %v195 = vmul.f32 %v124, %v147
  %v196 = vmul.f32 %v125, %v147
  %v197 = vmul.f32 %v126, %v147
  %v198 = vmul.f32 %v127, %v147
  %v199 = vmul.f32 %v128, %v147
  %v200 = vmul.f32 %v129, %v147
  %v201 = vmul.f32 %v130, %v147
  %v202 = vmul.f32 %v131, %v147
  %v203 = vmul.f32 %v132, %v147
  %v204 = vmul.f32 %v133, %v147
  %v205 = vmul.f32 %v134, %v147
  %v206 = vmul.f32 %v135, %v147
  %v207 = vmul.f32 %v136, %v147
  %v208 = vmul.f32 %v137, %v147
  %v209 = vmul.f32 %v138, %v147
  %v210 = vmul.f32 %v139, %v147
  %v211 = vmul.f32 %v140, %v147
  %v212 = vmul.f32 %v141, %v147
  %v213 = vld [vmem:[%s2] sm:$0x1]
  %v215 = vlaneseq
  %v216 = vshrl.u32 %v215, 7
  %v217 = vsub.s32 0, %v216
  %v218 = vrot.slane %v213, %v217
  %v220 = vadd.f32 %v149, %v218
  %v221 = vadd.f32 %v150, %v218
  %v222 = vadd.f32 %v151, %v218
  %v223 = vadd.f32 %v152, %v218
  %v224 = vadd.f32 %v153, %v218
  %v225 = vadd.f32 %v154, %v218
  %v226 = vadd.f32 %v155, %v218
  %v227 = vadd.f32 %v156, %v218
  %v228 = vadd.f32 %v157, %v218
  %v229 = vadd.f32 %v158, %v218
  %v230 = vadd.f32 %v159, %v218
  %v231 = vadd.f32 %v160, %v218
  %v232 = vadd.f32 %v161, %v218
  %v233 = vadd.f32 %v162, %v218
  %v234 = vadd.f32 %v163, %v218
  %v235 = vadd.f32 %v164, %v218
  %v236 = vadd.f32 %v165, %v218
  %v237 = vadd.f32 %v166, %v218
  %v238 = vadd.f32 %v167, %v218
  %v239 = vadd.f32 %v168, %v218
  %v240 = vadd.f32 %v169, %v218
  %v241 = vadd.f32 %v170, %v218
  %v242 = vadd.f32 %v171, %v218
  %v243 = vadd.f32 %v172, %v218
  %v244 = vadd.f32 %v173, %v218
  %v245 = vadd.f32 %v174, %v218
  %v246 = vadd.f32 %v175, %v218
  %v247 = vadd.f32 %v176, %v218
  %v248 = vadd.f32 %v177, %v218
  %v249 = vadd.f32 %v178, %v218
  %v250 = vadd.f32 %v179, %v218
  %v251 = vadd.f32 %v180, %v218
  %v252 = vadd.f32 %v181, %v218
  %v253 = vadd.f32 %v182, %v218
  %v254 = vadd.f32 %v183, %v218
  %v255 = vadd.f32 %v184, %v218
  %v256 = vadd.f32 %v185, %v218
  %v257 = vadd.f32 %v186, %v218
  %v258 = vadd.f32 %v187, %v218
  %v259 = vadd.f32 %v188, %v218
  %v260 = vadd.f32 %v189, %v218
  %v261 = vadd.f32 %v190, %v218
  %v262 = vadd.f32 %v191, %v218
  %v263 = vadd.f32 %v192, %v218
  %v264 = vadd.f32 %v193, %v218
  %v265 = vadd.f32 %v194, %v218
  %v266 = vadd.f32 %v195, %v218
  %v267 = vadd.f32 %v196, %v218
  %v268 = vadd.f32 %v197, %v218
  %v269 = vadd.f32 %v198, %v218
  %v270 = vadd.f32 %v199, %v218
  %v271 = vadd.f32 %v200, %v218
  %v272 = vadd.f32 %v201, %v218
  %v273 = vadd.f32 %v202, %v218
  %v274 = vadd.f32 %v203, %v218
  %v275 = vadd.f32 %v204, %v218
  %v276 = vadd.f32 %v205, %v218
  %v277 = vadd.f32 %v206, %v218
  %v278 = vadd.f32 %v207, %v218
  %v279 = vadd.f32 %v208, %v218
  %v280 = vadd.f32 %v209, %v218
  %v281 = vadd.f32 %v210, %v218
  %v282 = vadd.f32 %v211, %v218
  %v283 = vadd.f32 %v212, %v218
  %v284 = vmul.f32 %v220, 0.5
  %v285 = vmul.f32 %v221, 0.5
  %v286 = vmul.f32 %v222, 0.5
  %v287 = vmul.f32 %v223, 0.5
  %v288 = vmul.f32 %v224, 0.5
  %v289 = vmul.f32 %v225, 0.5
  %v290 = vmul.f32 %v226, 0.5
  %v291 = vmul.f32 %v227, 0.5
  %v292 = vmul.f32 %v228, 0.5
  %v293 = vmul.f32 %v229, 0.5
  %v294 = vmul.f32 %v230, 0.5
  %v295 = vmul.f32 %v231, 0.5
  %v296 = vmul.f32 %v232, 0.5
  %v297 = vmul.f32 %v233, 0.5
  %v298 = vmul.f32 %v234, 0.5
  %v299 = vmul.f32 %v235, 0.5
  %v300 = vmul.f32 %v236, 0.5
  %v301 = vmul.f32 %v237, 0.5
  %v302 = vmul.f32 %v238, 0.5
  %v303 = vmul.f32 %v239, 0.5
  %v304 = vmul.f32 %v240, 0.5
  %v305 = vmul.f32 %v241, 0.5
  %v306 = vmul.f32 %v242, 0.5
  %v307 = vmul.f32 %v243, 0.5
  %v308 = vmul.f32 %v244, 0.5
  %v309 = vmul.f32 %v245, 0.5
  %v310 = vmul.f32 %v246, 0.5
  %v311 = vmul.f32 %v247, 0.5
  %v312 = vmul.f32 %v248, 0.5
  %v313 = vmul.f32 %v249, 0.5
  %v314 = vmul.f32 %v250, 0.5
  %v315 = vmul.f32 %v251, 0.5
  %v316 = vmul.f32 %v252, 0.5
  %v317 = vmul.f32 %v253, 0.5
  %v318 = vmul.f32 %v254, 0.5
  %v319 = vmul.f32 %v255, 0.5
  %v320 = vmul.f32 %v256, 0.5
  %v321 = vmul.f32 %v257, 0.5
  %v322 = vmul.f32 %v258, 0.5
  %v323 = vmul.f32 %v259, 0.5
  %v324 = vmul.f32 %v260, 0.5
  %v325 = vmul.f32 %v261, 0.5
  %v326 = vmul.f32 %v262, 0.5
  %v327 = vmul.f32 %v263, 0.5
  %v328 = vmul.f32 %v264, 0.5
  %v329 = vmul.f32 %v265, 0.5
  %v330 = vmul.f32 %v266, 0.5
  %v331 = vmul.f32 %v267, 0.5
  %v332 = vmul.f32 %v268, 0.5
  %v333 = vmul.f32 %v269, 0.5
  %v334 = vmul.f32 %v270, 0.5
  %v335 = vmul.f32 %v271, 0.5
  %v336 = vmul.f32 %v272, 0.5
  %v337 = vmul.f32 %v273, 0.5
  %v338 = vmul.f32 %v274, 0.5
  %v339 = vmul.f32 %v275, 0.5
  %v340 = vmul.f32 %v276, 0.5
  %v341 = vmul.f32 %v277, 0.5
  %v342 = vmul.f32 %v278, 0.5
  %v343 = vmul.f32 %v279, 0.5
  %v344 = vmul.f32 %v280, 0.5
  %v345 = vmul.f32 %v281, 0.5
  %v346 = vmul.f32 %v282, 0.5
  %v347 = vmul.f32 %v283, 0.5
  %v348 = vmul.f32 %v220, 0.70710677
  %v349 = vmul.f32 %v221, 0.70710677
  %v350 = vmul.f32 %v222, 0.70710677
  %v351 = vmul.f32 %v223, 0.70710677
  %v352 = vmul.f32 %v224, 0.70710677
  %v353 = vmul.f32 %v225, 0.70710677
  %v354 = vmul.f32 %v226, 0.70710677
  %v355 = vmul.f32 %v227, 0.70710677
  %v356 = vmul.f32 %v228, 0.70710677
  %v357 = vmul.f32 %v229, 0.70710677
  %v358 = vmul.f32 %v230, 0.70710677
  %v359 = vmul.f32 %v231, 0.70710677
  %v360 = vmul.f32 %v232, 0.70710677
  %v361 = vmul.f32 %v233, 0.70710677
  %v362 = vmul.f32 %v234, 0.70710677
  %v363 = vmul.f32 %v235, 0.70710677
  %v364 = vmul.f32 %v236, 0.70710677
  %v365 = vmul.f32 %v237, 0.70710677
  %v366 = vmul.f32 %v238, 0.70710677
  %v367 = vmul.f32 %v239, 0.70710677
  %v368 = vmul.f32 %v240, 0.70710677
  %v369 = vmul.f32 %v241, 0.70710677
  %v370 = vmul.f32 %v242, 0.70710677
  %v371 = vmul.f32 %v243, 0.70710677
  %v372 = vmul.f32 %v244, 0.70710677
  %v373 = vmul.f32 %v245, 0.70710677
  %v374 = vmul.f32 %v246, 0.70710677
  %v375 = vmul.f32 %v247, 0.70710677
  %v376 = vmul.f32 %v248, 0.70710677
  %v377 = vmul.f32 %v249, 0.70710677
  %v378 = vmul.f32 %v250, 0.70710677
  %v379 = vmul.f32 %v251, 0.70710677
  %v380 = vmul.f32 %v252, 0.70710677
  %v381 = vmul.f32 %v253, 0.70710677
  %v382 = vmul.f32 %v254, 0.70710677
  %v383 = vmul.f32 %v255, 0.70710677
  %v384 = vmul.f32 %v256, 0.70710677
  %v385 = vmul.f32 %v257, 0.70710677
  %v386 = vmul.f32 %v258, 0.70710677
  %v387 = vmul.f32 %v259, 0.70710677
  %v388 = vmul.f32 %v260, 0.70710677
  %v389 = vmul.f32 %v261, 0.70710677
  %v390 = vmul.f32 %v262, 0.70710677
  %v391 = vmul.f32 %v263, 0.70710677
  %v392 = vmul.f32 %v264, 0.70710677
  %v393 = vmul.f32 %v265, 0.70710677
  %v394 = vmul.f32 %v266, 0.70710677
  %v395 = vmul.f32 %v267, 0.70710677
  %v396 = vmul.f32 %v268, 0.70710677
  %v397 = vmul.f32 %v269, 0.70710677
  %v398 = vmul.f32 %v270, 0.70710677
  %v399 = vmul.f32 %v271, 0.70710677
  %v400 = vmul.f32 %v272, 0.70710677
  %v401 = vmul.f32 %v273, 0.70710677
  %v402 = vmul.f32 %v274, 0.70710677
  %v403 = vmul.f32 %v275, 0.70710677
  %v404 = vmul.f32 %v276, 0.70710677
  %v405 = vmul.f32 %v277, 0.70710677
  %v406 = vmul.f32 %v278, 0.70710677
  %v407 = vmul.f32 %v279, 0.70710677
  %v408 = vmul.f32 %v280, 0.70710677
  %v409 = vmul.f32 %v281, 0.70710677
  %v410 = vmul.f32 %v282, 0.70710677
  %v411 = vmul.f32 %v283, 0.70710677
  %v412 = verf.f32.pop %v348
  %v413 = verf.f32.pop %v349
  %v414 = verf.f32.pop %v350
  %v415 = verf.f32.pop %v351
  %v416 = verf.f32.pop %v352
  %v417 = verf.f32.pop %v353
  %v418 = verf.f32.pop %v354
  %v419 = verf.f32.pop %v355
  %v420 = verf.f32.pop %v356
  %v421 = verf.f32.pop %v357
  %v422 = verf.f32.pop %v358
  %v423 = verf.f32.pop %v359
  %v424 = verf.f32.pop %v360
  %v425 = verf.f32.pop %v361
  %v426 = verf.f32.pop %v362
  %v427 = verf.f32.pop %v363
  %v428 = verf.f32.pop %v364
  %v429 = verf.f32.pop %v365
  %v430 = verf.f32.pop %v366
  %v431 = verf.f32.pop %v367
  %v432 = verf.f32.pop %v368
  %v433 = verf.f32.pop %v369
  %v434 = verf.f32.pop %v370
  %v435 = verf.f32.pop %v371
  %v436 = verf.f32.pop %v372
  %v437 = verf.f32.pop %v373
  %v438 = verf.f32.pop %v374
  %v439 = verf.f32.pop %v375
  %v440 = verf.f32.pop %v376
  %v441 = verf.f32.pop %v377
  %v442 = verf.f32.pop %v378
  %v443 = verf.f32.pop %v379
  %v444 = verf.f32.pop %v380
  %v445 = verf.f32.pop %v381
  %v446 = verf.f32.pop %v382
  %v447 = verf.f32.pop %v383
  %v448 = verf.f32.pop %v384
  %v449 = verf.f32.pop %v385
  %v450 = verf.f32.pop %v386
  %v451 = verf.f32.pop %v387
  %v452 = verf.f32.pop %v388
  %v453 = verf.f32.pop %v389
  %v454 = verf.f32.pop %v390
  %v455 = verf.f32.pop %v391
  %v456 = verf.f32.pop %v392
  %v457 = verf.f32.pop %v393
  %v458 = verf.f32.pop %v394
  %v459 = verf.f32.pop %v395
  %v460 = verf.f32.pop %v396
  %v461 = verf.f32.pop %v397
  %v462 = verf.f32.pop %v398
  %v463 = verf.f32.pop %v399
  %v464 = verf.f32.pop %v400
  %v465 = verf.f32.pop %v401
  %v466 = verf.f32.pop %v402
  %v467 = verf.f32.pop %v403
  %v468 = verf.f32.pop %v404
  %v469 = verf.f32.pop %v405
  %v470 = verf.f32.pop %v406
  %v471 = verf.f32.pop %v407
  %v472 = verf.f32.pop %v408
  %v473 = verf.f32.pop %v409
  %v474 = verf.f32.pop %v410
  %v475 = verf.f32.pop %v411
  %v476 = vadd.f32 %v412, 1.0
  %v477 = vadd.f32 %v413, 1.0
  %v478 = vadd.f32 %v414, 1.0
  %v479 = vadd.f32 %v415, 1.0
  %v480 = vadd.f32 %v416, 1.0
  %v481 = vadd.f32 %v417, 1.0
  %v482 = vadd.f32 %v418, 1.0
  %v483 = vadd.f32 %v419, 1.0
  %v484 = vadd.f32 %v420, 1.0
  %v485 = vadd.f32 %v421, 1.0
  %v486 = vadd.f32 %v422, 1.0
  %v487 = vadd.f32 %v423, 1.0
  %v488 = vadd.f32 %v424, 1.0
  %v489 = vadd.f32 %v425, 1.0
  %v490 = vadd.f32 %v426, 1.0
  %v491 = vadd.f32 %v427, 1.0
  %v492 = vadd.f32 %v428, 1.0
  %v493 = vadd.f32 %v429, 1.0
  %v494 = vadd.f32 %v430, 1.0
  %v495 = vadd.f32 %v431, 1.0
  %v496 = vadd.f32 %v432, 1.0
  %v497 = vadd.f32 %v433, 1.0
  %v498 = vadd.f32 %v434, 1.0
  %v499 = vadd.f32 %v435, 1.0
  %v500 = vadd.f32 %v436, 1.0
  %v501 = vadd.f32 %v437, 1.0
  %v502 = vadd.f32 %v438, 1.0
  %v503 = vadd.f32 %v439, 1.0
  %v504 = vadd.f32 %v440, 1.0
  %v505 = vadd.f32 %v441, 1.0
  %v506 = vadd.f32 %v442, 1.0
  %v507 = vadd.f32 %v443, 1.0
  %v508 = vadd.f32 %v444, 1.0
  %v509 = vadd.f32 %v445, 1.0
  %v510 = vadd.f32 %v446, 1.0
  %v511 = vadd.f32 %v447, 1.0
  %v512 = vadd.f32 %v448, 1.0
  %v513 = vadd.f32 %v449, 1.0
  %v514 = vadd.f32 %v450, 1.0
  %v515 = vadd.f32 %v451, 1.0
  %v516 = vadd.f32 %v452, 1.0
  %v517 = vadd.f32 %v453, 1.0
  %v518 = vadd.f32 %v454, 1.0
  %v519 = vadd.f32 %v455, 1.0
  %v520 = vadd.f32 %v456, 1.0
  %v521 = vadd.f32 %v457, 1.0
  %v522 = vadd.f32 %v458, 1.0
  %v523 = vadd.f32 %v459, 1.0
  %v524 = vadd.f32 %v460, 1.0
  %v525 = vadd.f32 %v461, 1.0
  %v526 = vadd.f32 %v462, 1.0
  %v527 = vadd.f32 %v463, 1.0
  %v528 = vadd.f32 %v464, 1.0
  %v529 = vadd.f32 %v465, 1.0
  %v530 = vadd.f32 %v466, 1.0
  %v531 = vadd.f32 %v467, 1.0
  %v532 = vadd.f32 %v468, 1.0
  %v533 = vadd.f32 %v469, 1.0
  %v534 = vadd.f32 %v470, 1.0
  %v535 = vadd.f32 %v471, 1.0
  %v536 = vadd.f32 %v472, 1.0
  %v537 = vadd.f32 %v473, 1.0
  %v538 = vadd.f32 %v474, 1.0
  %v539 = vadd.f32 %v475, 1.0
  %v540 = vmul.f32 %v284, %v476
  %v541 = vmul.f32 %v285, %v477
  %v542 = vmul.f32 %v286, %v478
  %v543 = vmul.f32 %v287, %v479
  %v544 = vmul.f32 %v288, %v480
  %v545 = vmul.f32 %v289, %v481
  %v546 = vmul.f32 %v290, %v482
  %v547 = vmul.f32 %v291, %v483
  %v548 = vmul.f32 %v292, %v484
  %v549 = vmul.f32 %v293, %v485
  %v550 = vmul.f32 %v294, %v486
  %v551 = vmul.f32 %v295, %v487
  %v552 = vmul.f32 %v296, %v488
  %v553 = vmul.f32 %v297, %v489
  %v554 = vmul.f32 %v298, %v490
  %v555 = vmul.f32 %v299, %v491
  %v556 = vmul.f32 %v300, %v492
  %v557 = vmul.f32 %v301, %v493
  %v558 = vmul.f32 %v302, %v494
  %v559 = vmul.f32 %v303, %v495
  %v560 = vmul.f32 %v304, %v496
  %v561 = vmul.f32 %v305, %v497
  %v562 = vmul.f32 %v306, %v498
  %v563 = vmul.f32 %v307, %v499
  %v564 = vmul.f32 %v308, %v500
  %v565 = vmul.f32 %v309, %v501
  %v566 = vmul.f32 %v310, %v502
  %v567 = vmul.f32 %v311, %v503
  %v568 = vmul.f32 %v312, %v504
  %v569 = vmul.f32 %v313, %v505
  %v570 = vmul.f32 %v314, %v506
  %v571 = vmul.f32 %v315, %v507
  %v572 = vmul.f32 %v316, %v508
  %v573 = vmul.f32 %v317, %v509
  %v574 = vmul.f32 %v318, %v510
  %v575 = vmul.f32 %v319, %v511
  %v576 = vmul.f32 %v320, %v512
  %v577 = vmul.f32 %v321, %v513
  %v578 = vmul.f32 %v322, %v514
  %v579 = vmul.f32 %v323, %v515
  %v580 = vmul.f32 %v324, %v516
  %v581 = vmul.f32 %v325, %v517
  %v582 = vmul.f32 %v326, %v518
  %v583 = vmul.f32 %v327, %v519
  %v584 = vmul.f32 %v328, %v520
  %v585 = vmul.f32 %v329, %v521
  %v586 = vmul.f32 %v330, %v522
  %v587 = vmul.f32 %v331, %v523
  %v588 = vmul.f32 %v332, %v524
  %v589 = vmul.f32 %v333, %v525
  %v590 = vmul.f32 %v334, %v526
  %v591 = vmul.f32 %v335, %v527
  %v592 = vmul.f32 %v336, %v528
  %v593 = vmul.f32 %v337, %v529
  %v594 = vmul.f32 %v338, %v530
  %v595 = vmul.f32 %v339, %v531
  %v596 = vmul.f32 %v340, %v532
  %v597 = vmul.f32 %v341, %v533
  %v598 = vmul.f32 %v342, %v534
  %v599 = vmul.f32 %v343, %v535
  %v600 = vmul.f32 %v344, %v536
  %v601 = vmul.f32 %v345, %v537
  %v602 = vmul.f32 %v346, %v538
  %v603 = vmul.f32 %v347, %v539
  %604 = vst [vmem:[%s3] sm:$0xff] %v540
  %605 = vst [vmem:[%s3 + $0x8] sm:$0xff] %v541
  %606 = vst [vmem:[%s3 + $0x10] sm:$0xff] %v542
  %607 = vst [vmem:[%s3 + $0x18] sm:$0xff] %v543
  %608 = vst [vmem:[%s3 + $0x20] sm:$0xff] %v544
  %609 = vst [vmem:[%s3 + $0x28] sm:$0xff] %v545
  %610 = vst [vmem:[%s3 + $0x30] sm:$0xff] %v546
  %611 = vst [vmem:[%s3 + $0x38] sm:$0xff] %v547
  %612 = vst [vmem:[%s3 + $0x40] sm:$0xff] %v548
  %613 = vst [vmem:[%s3 + $0x48] sm:$0xff] %v549
  %614 = vst [vmem:[%s3 + $0x50] sm:$0xff] %v550
  %615 = vst [vmem:[%s3 + $0x58] sm:$0xff] %v551
  %616 = vst [vmem:[%s3 + $0x60] sm:$0xff] %v552
  %617 = vst [vmem:[%s3 + $0x68] sm:$0xff] %v553
  %618 = vst [vmem:[%s3 + $0x70] sm:$0xff] %v554
  %619 = vst [vmem:[%s3 + $0x78] sm:$0xff] %v555
  %620 = vst [vmem:[%s3 + $0x80] sm:$0xff] %v556
  %621 = vst [vmem:[%s3 + $0x88] sm:$0xff] %v557
  %622 = vst [vmem:[%s3 + $0x90] sm:$0xff] %v558
  %623 = vst [vmem:[%s3 + $0x98] sm:$0xff] %v559
  %624 = vst [vmem:[%s3 + $0xa0] sm:$0xff] %v560
  %625 = vst [vmem:[%s3 + $0xa8] sm:$0xff] %v561
  %626 = vst [vmem:[%s3 + $0xb0] sm:$0xff] %v562
  %627 = vst [vmem:[%s3 + $0xb8] sm:$0xff] %v563
  %628 = vst [vmem:[%s3 + $0xc0] sm:$0xff] %v564
  %629 = vst [vmem:[%s3 + $0xc8] sm:$0xff] %v565
  %630 = vst [vmem:[%s3 + $0xd0] sm:$0xff] %v566
  %631 = vst [vmem:[%s3 + $0xd8] sm:$0xff] %v567
  %632 = vst [vmem:[%s3 + $0xe0] sm:$0xff] %v568
  %633 = vst [vmem:[%s3 + $0xe8] sm:$0xff] %v569
  %634 = vst [vmem:[%s3 + $0xf0] sm:$0xff] %v570
  %635 = vst [vmem:[%s3 + $0xf8] sm:$0xff] %v571
  %636 = vst [vmem:[%s3 + $0x100] sm:$0xff] %v572
  %637 = vst [vmem:[%s3 + $0x108] sm:$0xff] %v573
  %638 = vst [vmem:[%s3 + $0x110] sm:$0xff] %v574
  %639 = vst [vmem:[%s3 + $0x118] sm:$0xff] %v575
  %640 = vst [vmem:[%s3 + $0x120] sm:$0xff] %v576
  %641 = vst [vmem:[%s3 + $0x128] sm:$0xff] %v577
  %642 = vst [vmem:[%s3 + $0x130] sm:$0xff] %v578
  %643 = vst [vmem:[%s3 + $0x138] sm:$0xff] %v579
  %644 = vst [vmem:[%s3 + $0x140] sm:$0xff] %v580
  %645 = vst [vmem:[%s3 + $0x148] sm:$0xff] %v581
  %646 = vst [vmem:[%s3 + $0x150] sm:$0xff] %v582
  %647 = vst [vmem:[%s3 + $0x158] sm:$0xff] %v583
  %648 = vst [vmem:[%s3 + $0x160] sm:$0xff] %v584
  %649 = vst [vmem:[%s3 + $0x168] sm:$0xff] %v585
  %650 = vst [vmem:[%s3 + $0x170] sm:$0xff] %v586
  %651 = vst [vmem:[%s3 + $0x178] sm:$0xff] %v587
  %652 = vst [vmem:[%s3 + $0x180] sm:$0xff] %v588
  %653 = vst [vmem:[%s3 + $0x188] sm:$0xff] %v589
  %654 = vst [vmem:[%s3 + $0x190] sm:$0xff] %v590
  %655 = vst [vmem:[%s3 + $0x198] sm:$0xff] %v591
  %656 = vst [vmem:[%s3 + $0x1a0] sm:$0xff] %v592
  %657 = vst [vmem:[%s3 + $0x1a8] sm:$0xff] %v593
  %658 = vst [vmem:[%s3 + $0x1b0] sm:$0xff] %v594
  %659 = vst [vmem:[%s3 + $0x1b8] sm:$0xff] %v595
  %660 = vst [vmem:[%s3 + $0x1c0] sm:$0xff] %v596
  %661 = vst [vmem:[%s3 + $0x1c8] sm:$0xff] %v597
  %662 = vst [vmem:[%s3 + $0x1d0] sm:$0xff] %v598
  %663 = vst [vmem:[%s3 + $0x1d8] sm:$0xff] %v599
  %664 = vst [vmem:[%s3 + $0x1e0] sm:$0xff] %v600
  %665 = vst [vmem:[%s3 + $0x1e8] sm:$0xff] %v601
  %666 = vst [vmem:[%s3 + $0x1f0] sm:$0xff] %v602
  %667 = vst [vmem:[%s3 + $0x1f8] sm:$0xff] %v603
  // Predicated region
  $region14: #{conv_forward.3} parent=0 // pred_check
    _
  $region15: #{conv_forward.3} parent=0 // pred_check_branch
    %669 = sbr.rel (0) target = $region17
  $region16: #{conv_forward.3} parent=0 // pred_region
    _
  $region17: #{conv_forward.3} parent=0 // pred_fallthru
    _
  // Predicated region
  $region18: #{conv_forward.3} parent=0 // pred_check
    _
  $region19: #{conv_forward.3} parent=0 // pred_check_branch
    %671 = sbr.rel (0) target = $region21
  $region20: #{conv_forward.3} parent=0 // pred_region
    _
  $region21: #{conv_forward.3} parent=0 // pred_fallthru
    _

// kernel: conv_forward.2
$region0: #{conv_forward.2}
  #allocation0 [shape = 'u32[]', space=smem, size = 0x4, offset = 0x4, fixed_abs, tag = 'smem constant byte address 0x4 - core index']
  #allocation1 [shape = 'u32[144,128]{1,0:T(1,128)}', space=vmem, size = 0x12000, scoped, tag = 'internal scratch']
  %s0 = inlined_call_operand.vmem [shape: bf16[512,128], index: 0, kind: input, shape index: {}]
  %s1 = inlined_call_operand.vmem [shape: bf16[128,128], index: 1, kind: input, shape index: {}]
  %s2 = inlined_call_operand.vmem [shape: bf16[512,128], index: 2, kind: output, shape index: {0}]
  %s3 = inlined_call_operand.vmem [shape: f32[1,2,128], index: 3, kind: output, shape index: {1}]
  %4 = xla_tuple %s2, %s3
  %s5 = sld [smem:[#allocation0]]
  $region26: #{conv_forward.2} parent=0
    _
  %s7 = ssub.s32 1, %s5
  %s8 = scalar_select 0, %s7, %s5
  // Predicated region
  $region2: #{conv_forward.2} parent=0 // pred_check
    _
  $region3: #{conv_forward.2} parent=0 // pred_check_branch
    %10 = sbr.rel (0) target = $region5
  $region4: #{conv_forward.2} parent=0 // pred_region
    _
  $region5: #{conv_forward.2} parent=0 // pred_fallthru
    _
  // Predicated region
  $region6: #{conv_forward.2} parent=0 // pred_check
    _
  $region7: #{conv_forward.2} parent=0 // pred_check_branch
    %12 = sbr.rel (0) target = $region9
  $region8: #{conv_forward.2} parent=0 // pred_region
    _
  $region9: #{conv_forward.2} parent=0 // pred_fallthru
    _
  %v14 = vld [vmem:[%s0] sm:$0xf]
  %v15 = vld [vmem:[%s0 + $0x4] sm:$0xf]
  %v16 = vld [vmem:[%s0 + $0x8] sm:$0xf]
  %v17 = vld [vmem:[%s0 + $0xc] sm:$0xf]
  %v18 = vld [vmem:[%s0 + $0x10] sm:$0xf]
  %v19 = vld [vmem:[%s0 + $0x14] sm:$0xf]
  %v20 = vld [vmem:[%s0 + $0x18] sm:$0xf]
  %v21 = vld [vmem:[%s0 + $0x1c] sm:$0xf]
  %v22 = vld [vmem:[%s0 + $0x20] sm:$0xf]
  %v23 = vld [vmem:[%s0 + $0x24] sm:$0xf]
  %v24 = vld [vmem:[%s0 + $0x28] sm:$0xf]
  %v25 = vld [vmem:[%s0 + $0x2c] sm:$0xf]
  %v26 = vld [vmem:[%s0 + $0x30] sm:$0xf]
  %v27 = vld [vmem:[%s0 + $0x34] sm:$0xf]
  %v28 = vld [vmem:[%s0 + $0x38] sm:$0xf]
  %v29 = vld [vmem:[%s0 + $0x3c] sm:$0xf]
  %v30 = vld [vmem:[%s0 + $0x40] sm:$0xf]
  %v31 = vld [vmem:[%s0 + $0x44] sm:$0xf]
  %v32 = vld [vmem:[%s0 + $0x48] sm:$0xf]
  %v33 = vld [vmem:[%s0 + $0x4c] sm:$0xf]
  %v34 = vld [vmem:[%s0 + $0x50] sm:$0xf]
  %v35 = vld [vmem:[%s0 + $0x54] sm:$0xf]
  %v36 = vld [vmem:[%s0 + $0x58] sm:$0xf]
  %v37 = vld [vmem:[%s0 + $0x5c] sm:$0xf]
  %v38 = vld [vmem:[%s0 + $0x60] sm:$0xf]
  %v39 = vld [vmem:[%s0 + $0x64] sm:$0xf]
  %v40 = vld [vmem:[%s0 + $0x68] sm:$0xf]
  %v41 = vld [vmem:[%s0 + $0x6c] sm:$0xf]
  %v42 = vld [vmem:[%s0 + $0x70] sm:$0xf]
  %v43 = vld [vmem:[%s0 + $0x74] sm:$0xf]
  %v44 = vld [vmem:[%s0 + $0x78] sm:$0xf]
  %v45 = vld [vmem:[%s0 + $0x7c] sm:$0xf]
  %v46 = vld [vmem:[%s0 + $0x80] sm:$0xf]
  %v47 = vld [vmem:[%s0 + $0x84] sm:$0xf]
  %v48 = vld [vmem:[%s0 + $0x88] sm:$0xf]
  %v49 = vld [vmem:[%s0 + $0x8c] sm:$0xf]
  %v50 = vld [vmem:[%s0 + $0x90] sm:$0xf]
  %v51 = vld [vmem:[%s0 + $0x94] sm:$0xf]
  %v52 = vld [vmem:[%s0 + $0x98] sm:$0xf]
  %v53 = vld [vmem:[%s0 + $0x9c] sm:$0xf]
  %v54 = vld [vmem:[%s0 + $0xa0] sm:$0xf]
  %v55 = vld [vmem:[%s0 + $0xa4] sm:$0xf]
  %v56 = vld [vmem:[%s0 + $0xa8] sm:$0xf]
  %v57 = vld [vmem:[%s0 + $0xac] sm:$0xf]
  %v58 = vld [vmem:[%s0 + $0xb0] sm:$0xf]
  %v59 = vld [vmem:[%s0 + $0xb4] sm:$0xf]
  %v60 = vld [vmem:[%s0 + $0xb8] sm:$0xf]
  %v61 = vld [vmem:[%s0 + $0xbc] sm:$0xf]
  %v62 = vld [vmem:[%s0 + $0xc0] sm:$0xf]
  %v63 = vld [vmem:[%s0 + $0xc4] sm:$0xf]
  %v64 = vld [vmem:[%s0 + $0xc8] sm:$0xf]
  %v65 = vld [vmem:[%s0 + $0xcc] sm:$0xf]
  %v66 = vld [vmem:[%s0 + $0xd0] sm:$0xf]
  %v67 = vld [vmem:[%s0 + $0xd4] sm:$0xf]
  %v68 = vld [vmem:[%s0 + $0xd8] sm:$0xf]
  %v69 = vld [vmem:[%s0 + $0xdc] sm:$0xf]
  %v70 = vld [vmem:[%s0 + $0xe0] sm:$0xf]
  %v71 = vld [vmem:[%s0 + $0xe4] sm:$0xf]
  %v72 = vld [vmem:[%s0 + $0xe8] sm:$0xf]
  %v73 = vld [vmem:[%s0 + $0xec] sm:$0xf]
  %v74 = vld [vmem:[%s0 + $0xf0] sm:$0xf]
  %v75 = vld [vmem:[%s0 + $0xf4] sm:$0xf]
  %v76 = vld [vmem:[%s0 + $0xf8] sm:$0xf]
  %v77 = vld [vmem:[%s0 + $0xfc] sm:$0xf]
  %v78 = vld [vmem:[%s1] sm:$0xf]
  %v79 = vld [vmem:[%s1 + $0x4] sm:$0xf]
  %v80 = vld [vmem:[%s1 + $0x8] sm:$0xf]
  %v81 = vld [vmem:[%s1 + $0xc] sm:$0xf]
  %v82 = vld [vmem:[%s1 + $0x10] sm:$0xf]
  %v83 = vld [vmem:[%s1 + $0x14] sm:$0xf]
  %v84 = vld [vmem:[%s1 + $0x18] sm:$0xf]
  %v85 = vld [vmem:[%s1 + $0x1c] sm:$0xf]
  %v86 = vld [vmem:[%s1 + $0x20] sm:$0xf]
  %v87 = vld [vmem:[%s1 + $0x24] sm:$0xf]
  %v88 = vld [vmem:[%s1 + $0x28] sm:$0xf]
  %v89 = vld [vmem:[%s1 + $0x2c] sm:$0xf]
  %v90 = vld [vmem:[%s1 + $0x30] sm:$0xf]
  %v91 = vld [vmem:[%s1 + $0x34] sm:$0xf]
  %v92 = vld [vmem:[%s1 + $0x38] sm:$0xf]
  %v93 = vld [vmem:[%s1 + $0x3c] sm:$0xf]
  %v158 = vunpack.c.l.b16 %v14
  %v159 = vunpack.c.l.b16 %v15
  %v160 = vunpack.c.l.b16 %v16
  %v161 = vunpack.c.l.b16 %v17
  %v162 = vunpack.c.l.b16 %v18
  %v163 = vunpack.c.l.b16 %v19
  %v164 = vunpack.c.l.b16 %v20
  %v165 = vunpack.c.l.b16 %v21
  %v166 = vunpack.c.l.b16 %v22
  %v167 = vunpack.c.l.b16 %v23
  %v168 = vunpack.c.l.b16 %v24
  %v169 = vunpack.c.l.b16 %v25
  %v170 = vunpack.c.l.b16 %v26
  %v171 = vunpack.c.l.b16 %v27
  %v172 = vunpack.c.l.b16 %v28
  %v173 = vunpack.c.l.b16 %v29
  %v174 = vunpack.c.l.b16 %v30
  %v175 = vunpack.c.l.b16 %v31
  %v176 = vunpack.c.l.b16 %v32
  %v177 = vunpack.c.l.b16 %v33
  %v178 = vunpack.c.l.b16 %v34
  %v179 = vunpack.c.l.b16 %v35
  %v180 = vunpack.c.l.b16 %v36
  %v181 = vunpack.c.l.b16 %v37
  %v182 = vunpack.c.l.b16 %v38
  %v183 = vunpack.c.l.b16 %v39
  %v184 = vunpack.c.l.b16 %v40
  %v185 = vunpack.c.l.b16 %v41
  %v186 = vunpack.c.l.b16 %v42
  %v187 = vunpack.c.l.b16 %v43
  %v188 = vunpack.c.l.b16 %v44
  %v189 = vunpack.c.l.b16 %v45
  %v190 = vunpack.c.l.b16 %v46
  %v191 = vunpack.c.l.b16 %v47
  %v192 = vunpack.c.l.b16 %v48
  %v193 = vunpack.c.l.b16 %v49
  %v194 = vunpack.c.l.b16 %v50
  %v195 = vunpack.c.l.b16 %v51
  %v196 = vunpack.c.l.b16 %v52
  %v197 = vunpack.c.l.b16 %v53
  %v198 = vunpack.c.l.b16 %v54
  %v199 = vunpack.c.l.b16 %v55
  %v200 = vunpack.c.l.b16 %v56
  %v201 = vunpack.c.l.b16 %v57
  %v202 = vunpack.c.l.b16 %v58
  %v203 = vunpack.c.l.b16 %v59
  %v204 = vunpack.c.l.b16 %v60
  %v205 = vunpack.c.l.b16 %v61
  %v206 = vunpack.c.l.b16 %v62
  %v207 = vunpack.c.l.b16 %v63
  %v208 = vunpack.c.l.b16 %v64
  %v209 = vunpack.c.l.b16 %v65
  %v210 = vunpack.c.l.b16 %v66
  %v211 = vunpack.c.l.b16 %v67
  %v212 = vunpack.c.l.b16 %v68
  %v213 = vunpack.c.l.b16 %v69
  %v214 = vunpack.c.l.b16 %v70
  %v215 = vunpack.c.l.b16 %v71
  %v216 = vunpack.c.l.b16 %v72
  %v217 = vunpack.c.l.b16 %v73
  %v218 = vunpack.c.l.b16 %v74
  %v219 = vunpack.c.l.b16 %v75
  %v220 = vunpack.c.l.b16 %v76
  %v221 = vunpack.c.l.b16 %v77
  %v222 = vpack.c.b16 %v159, %v158
  %v223 = vpack.c.b16 %v161, %v160
  %v224 = vpack.c.b16 %v163, %v162
  %v225 = vpack.c.b16 %v165, %v164
  %v226 = vpack.c.b16 %v167, %v166
  %v227 = vpack.c.b16 %v169, %v168
  %v228 = vpack.c.b16 %v171, %v170
  %v229 = vpack.c.b16 %v173, %v172
  %v230 = vpack.c.b16 %v175, %v174
  %v231 = vpack.c.b16 %v177, %v176
  %v232 = vpack.c.b16 %v179, %v178
  %v233 = vpack.c.b16 %v181, %v180
  %v234 = vpack.c.b16 %v183, %v182
  %v235 = vpack.c.b16 %v185, %v184
  %v236 = vpack.c.b16 %v187, %v186
  %v237 = vpack.c.b16 %v189, %v188
  %v238 = vpack.c.b16 %v191, %v190
  %v239 = vpack.c.b16 %v193, %v192
  %v240 = vpack.c.b16 %v195, %v194
  %v241 = vpack.c.b16 %v197, %v196
  %v242 = vpack.c.b16 %v199, %v198
  %v243 = vpack.c.b16 %v201, %v200
  %v244 = vpack.c.b16 %v203, %v202
  %v245 = vpack.c.b16 %v205, %v204
  %v246 = vpack.c.b16 %v207, %v206
  %v247 = vpack.c.b16 %v209, %v208
  %v248 = vpack.c.b16 %v211, %v210
  %v249 = vpack.c.b16 %v213, %v212
  %v250 = vpack.c.b16 %v215, %v214
  %v251 = vpack.c.b16 %v217, %v216
  %v252 = vpack.c.b16 %v219, %v218
  %v253 = vpack.c.b16 %v221, %v220
  %v302 = vunpack.c.l.b16 %v78
  %v303 = vunpack.c.l.b16 %v79
  %v304 = vunpack.c.l.b16 %v80
  %v305 = vunpack.c.l.b16 %v81
  %v306 = vunpack.c.l.b16 %v82
  %v307 = vunpack.c.l.b16 %v83
  %v308 = vunpack.c.l.b16 %v84
  %v309 = vunpack.c.l.b16 %v85
  %v310 = vunpack.c.l.b16 %v86
  %v311 = vunpack.c.l.b16 %v87
  %v312 = vunpack.c.l.b16 %v88
  %v313 = vunpack.c.l.b16 %v89
  %v314 = vunpack.c.l.b16 %v90
  %v315 = vunpack.c.l.b16 %v91
  %v316 = vunpack.c.l.b16 %v92
  %v317 = vunpack.c.l.b16 %v93
  %v318 = vpack.c.b16 %v303, %v302
  %v319 = vpack.c.b16 %v305, %v304
  %v320 = vpack.c.b16 %v307, %v306
  %v321 = vpack.c.b16 %v309, %v308
  %v322 = vpack.c.b16 %v311, %v310
  %v323 = vpack.c.b16 %v313, %v312
  %v324 = vpack.c.b16 %v315, %v314
  %v325 = vpack.c.b16 %v317, %v316
  %334 = vmatprep.subr.bf16.mxu0 0
  %335 = vmatpush1.bf16.msra.mxu0 %v318
  %336 = vmatprep.subr.bf16.mxu0 0
  %337 = vmatpush1.bf16.msra.mxu0 %v319
  %338 = vmatprep.subr.bf16.mxu0 0
  %339 = vmatpush1.bf16.msra.mxu0 %v320
  %340 = vmatprep.subr.bf16.mxu0 0
  %341 = vmatpush1.bf16.msra.mxu0 %v321
  %342 = vmatprep.subr.bf16.mxu0 0
  %343 = vmatpush1.bf16.msra.mxu0 %v322
  %344 = vmatprep.subr.bf16.mxu0 0
  %345 = vmatpush1.bf16.msra.mxu0 %v323
  %346 = vmatprep.subr.bf16.mxu0 0
  %347 = vmatpush1.bf16.msra.mxu0 %v324
  %348 = vmatprep.subr.bf16.mxu0 0
  %349 = vmatpush1.bf16.msra.mxu0 %v325
  %350 = vmatprep.subr.bf16.mxu0 0
  %351 = vmatpush1.bf16.msra.mxu0 0
  %352 = vmatprep.subr.bf16.mxu0 0
  %353 = vmatpush1.bf16.msra.mxu0 0
  %354 = vmatprep.subr.bf16.mxu0 0
  %355 = vmatpush1.bf16.msra.mxu0 0
  %356 = vmatprep.subr.bf16.mxu0 0
  %357 = vmatpush1.bf16.msra.mxu0 0
  %358 = vmatprep.subr.bf16.mxu0 0
  %359 = vmatpush1.bf16.msra.mxu0 0
  %360 = vmatprep.subr.bf16.mxu0 0
  %361 = vmatpush1.bf16.msra.mxu0 0
  %362 = vmatprep.subr.bf16.mxu0 0
  %363 = vmatpush1.bf16.msra.mxu0 0
  %364 = vmatprep.subr.bf16.mxu0 0
  %365 = vmatpush1.bf16.msra.mxu0 0
  %366 = vmatprep.mubr.bf16.mxu0 0
  %367 = vmatmul.mubr.bf16.gmra.mrb[0].mxu0 %v222
  %v368 = vpop.f32.mrb[0].mxu0
  %v369 = vadd.f32 0.0, %v368
  %v370 = vpop.f32.mrb[0].mxu0
  %v371 = vpop.f32.mrb[0].mxu0
  %v372 = vadd.f32 0.0, %v371
  %v373 = vpop.f32.mrb[0].mxu0
  %374 = vmatprep.mubr.bf16.mxu0 0
  %375 = vmatmul.mubr.bf16.gmra.mrb[0].mxu0 %v223
  %v376 = vpop.f32.mrb[0].mxu0
  %v377 = vadd.f32 0.0, %v376
  %v378 = vpop.f32.mrb[0].mxu0
  %v379 = vpop.f32.mrb[0].mxu0
  %v380 = vadd.f32 0.0, %v379
  %v381 = vpop.f32.mrb[0].mxu0
  %382 = vmatprep.mubr.bf16.mxu0 0
  %383 = vmatmul.mubr.bf16.gmra.mrb[0].mxu0 %v224
  %v384 = vpop.f32.mrb[0].mxu0
  %v385 = vadd.f32 0.0, %v384
  %v386 = vpop.f32.mrb[0].mxu0
  %v387 = vpop.f32.mrb[0].mxu0
  %v388 = vadd.f32 0.0, %v387
  %v389 = vpop.f32.mrb[0].mxu0
  %390 = vmatprep.mubr.bf16.mxu0 0
  %391 = vmatmul.mubr.bf16.gmra.mrb[0].mxu0 %v225
  %v392 = vpop.f32.mrb[0].mxu0
  %v393 = vadd.f32 0.0, %v392
  %v394 = vpop.f32.mrb[0].mxu0
  %v395 = vpop.f32.mrb[0].mxu0
  %v396 = vadd.f32 0.0, %v395
  %v397 = vpop.f32.mrb[0].mxu0
  %398 = vmatprep.mubr.bf16.mxu0 0
  %399 = vmatmul.mubr.bf16.gmra.mrb[0].mxu0 %v226
  %v400 = vpop.f32.mrb[0].mxu0
  %v401 = vadd.f32 0.0, %v400
  %v402 = vpop.f32.mrb[0].mxu0
  %v403 = vpop.f32.mrb[0].mxu0
  %v404 = vadd.f32 0.0, %v403
  %v405 = vpop.f32.mrb[0].mxu0
  %406 = vmatprep.mubr.bf16.mxu0 0
  %407 = vmatmul.mubr.bf16.gmra.mrb[0].mxu0 %v227
  %v408 = vpop.f32.mrb[0].mxu0
  %v409 = vadd.f32 0.0, %v408
  %v410 = vpop.f32.mrb[0].mxu0
  %v411 = vpop.f32.mrb[0].mxu0
  %v412 = vadd.f32 0.0, %v411
  %v413 = vpop.f32.mrb[0].mxu0
  %414 = vmatprep.mubr.bf16.mxu0 0
  %415 = vmatmul.mubr.bf16.gmra.mrb[0].mxu0 %v228
  %v416 = vpop.f32.mrb[0].mxu0
  %v417 = vadd.f32 0.0, %v416
  %v418 = vpop.f32.mrb[0].mxu0
  %v419 = vpop.f32.mrb[0].mxu0
  %v420 = vadd.f32 0.0, %v419
  %v421 = vpop.f32.mrb[0].mxu0
  %422 = vmatprep.mubr.bf16.mxu0 0
  %423 = vmatmul.mubr.bf16.gmra.mrb[0].mxu0 %v229
  %v424 = vpop.f32.mrb[0].mxu0
  %v425 = vadd.f32 0.0, %v424
  %v426 = vpop.f32.mrb[0].mxu0
  %v427 = vpop.f32.mrb[0].mxu0
  %v428 = vadd.f32 0.0, %v427
  %v429 = vpop.f32.mrb[0].mxu0
  %430 = vmatprep.mubr.bf16.mxu0 0
  %431 = vmatmul.mubr.bf16.gmra.mrb[0].mxu0 %v230
  %v432 = vpop.f32.mrb[0].mxu0
  %v433 = vadd.f32 0.0, %v432
  %v434 = vpop.f32.mrb[0].mxu0
  %v435 = vpop.f32.mrb[0].mxu0
  %v436 = vadd.f32 0.0, %v435
  %v437 = vpop.f32.mrb[0].mxu0
  %438 = vmatprep.mubr.bf16.mxu0 0
  %439 = vmatmul.mubr.bf16.gmra.mrb[0].mxu0 %v231
  %v440 = vpop.f32.mrb[0].mxu0
  %v441 = vadd.f32 0.0, %v440
  %v442 = vpop.f32.mrb[0].mxu0
  %v443 = vpop.f32.mrb[0].mxu0
  %v444 = vadd.f32 0.0, %v443
  %v445 = vpop.f32.mrb[0].mxu0
  %446 = vmatprep.mubr.bf16.mxu0 0
  %447 = vmatmul.mubr.bf16.gmra.mrb[0].mxu0 %v232
  %v448 = vpop.f32.mrb[0].mxu0
  %v449 = vadd.f32 0.0, %v448
  %v450 = vpop.f32.mrb[0].mxu0
  %v451 = vpop.f32.mrb[0].mxu0
  %v452 = vadd.f32 0.0, %v451
  %v453 = vpop.f32.mrb[0].mxu0
  %454 = vmatprep.mubr.bf16.mxu0 0
  %455 = vmatmul.mubr.bf16.gmra.mrb[0].mxu0 %v233
  %v456 = vpop.f32.mrb[0].mxu0
  %v457 = vadd.f32 0.0, %v456
  %v458 = vpop.f32.mrb[0].mxu0
  %v459 = vpop.f32.mrb[0].mxu0
  %v460 = vadd.f32 0.0, %v459
  %v461 = vpop.f32.mrb[0].mxu0
  %462 = vmatprep.mubr.bf16.mxu0 0
  %463 = vmatmul.mubr.bf16.gmra.mrb[0].mxu0 %v234
  %v464 = vpop.f32.mrb[0].mxu0
  %v465 = vadd.f32 0.0, %v464
  %v466 = vpop.f32.mrb[0].mxu0
  %v467 = vpop.f32.mrb[0].mxu0
  %v468 = vadd.f32 0.0, %v467
  %v469 = vpop.f32.mrb[0].mxu0
  %470 = vmatprep.mubr.bf16.mxu0 0
  %471 = vmatmul.mubr.bf16.gmra.mrb[0].mxu0 %v235
  %v472 = vpop.f32.mrb[0].mxu0
  %v473 = vadd.f32 0.0, %v472
  %v474 = vpop.f32.mrb[0].mxu0
  %v475 = vpop.f32.mrb[0].mxu0
  %v476 = vadd.f32 0.0, %v475
  %v477 = vpop.f32.mrb[0].mxu0
  %478 = vmatprep.mubr.bf16.mxu0 0
  %479 = vmatmul.mubr.bf16.gmra.mrb[0].mxu0 %v236
  %v480 = vpop.f32.mrb[0].mxu0
  %v481 = vadd.f32 0.0, %v480
  %v482 = vpop.f32.mrb[0].mxu0
  %v483 = vpop.f32.mrb[0].mxu0
  %v484 = vadd.f32 0.0, %v483
  %v485 = vpop.f32.mrb[0].mxu0
  %486 = vmatprep.mubr.bf16.mxu0 0
  %487 = vmatmul.mubr.bf16.gmra.mrb[0].mxu0 %v237
  %v488 = vpop.f32.mrb[0].mxu0
  %v489 = vadd.f32 0.0, %v488
  %v490 = vpop.f32.mrb[0].mxu0
  %v491 = vpop.f32.mrb[0].mxu0
  %v492 = vadd.f32 0.0, %v491
  %v493 = vpop.f32.mrb[0].mxu0
  %494 = vmatprep.mubr.bf16.mxu0 0
  %495 = vmatmul.mubr.bf16.gmra.mrb[0].mxu0 %v238
  %v496 = vpop.f32.mrb[0].mxu0
  %v497 = vadd.f32 0.0, %v496
  %v498 = vpop.f32.mrb[0].mxu0
  %v499 = vpop.f32.mrb[0].mxu0
  %v500 = vadd.f32 0.0, %v499
  %v501 = vpop.f32.mrb[0].mxu0
  %502 = vmatprep.mubr.bf16.mxu0 0
  %503 = vmatmul.mubr.bf16.gmra.mrb[0].mxu0 %v239
  %v504 = vpop.f32.mrb[0].mxu0
  %v505 = vadd.f32 0.0, %v504
  %v506 = vpop.f32.mrb[0].mxu0
  %v507 = vpop.f32.mrb[0].mxu0
  %v508 = vadd.f32 0.0, %v507
  %v509 = vpop.f32.mrb[0].mxu0
  %510 = vmatprep.mubr.bf16.mxu0 0
  %511 = vmatmul.mubr.bf16.gmra.mrb[0].mxu0 %v240
  %v512 = vpop.f32.mrb[0].mxu0
  %v513 = vadd.f32 0.0, %v512
  %v514 = vpop.f32.mrb[0].mxu0
  %v515 = vpop.f32.mrb[0].mxu0
  %v516 = vadd.f32 0.0, %v515
  %v517 = vpop.f32.mrb[0].mxu0
  %518 = vmatprep.mubr.bf16.mxu0 0
  %519 = vmatmul.mubr.bf16.gmra.mrb[0].mxu0 %v241
  %v520 = vpop.f32.mrb[0].mxu0
  %v521 = vadd.f32 0.0, %v520
  %v522 = vpop.f32.mrb[0].mxu0
  %v523 = vpop.f32.mrb[0].mxu0
  %v524 = vadd.f32 0.0, %v523
  %v525 = vpop.f32.mrb[0].mxu0
  %526 = vmatprep.mubr.bf16.mxu0 0
  %527 = vmatmul.mubr.bf16.gmra.mrb[0].mxu0 %v242
  %v528 = vpop.f32.mrb[0].mxu0
  %v529 = vadd.f32 0.0, %v528
  %v530 = vpop.f32.mrb[0].mxu0
  %v531 = vpop.f32.mrb[0].mxu0
  %v532 = vadd.f32 0.0, %v531
  %v533 = vpop.f32.mrb[0].mxu0
  %534 = vmatprep.mubr.bf16.mxu0 0
  %535 = vmatmul.mubr.bf16.gmra.mrb[0].mxu0 %v243
  %v536 = vpop.f32.mrb[0].mxu0
  %v537 = vadd.f32 0.0, %v536
  %v538 = vpop.f32.mrb[0].mxu0
  %v539 = vpop.f32.mrb[0].mxu0
  %v540 = vadd.f32 0.0, %v539
  %v541 = vpop.f32.mrb[0].mxu0
  %542 = vmatprep.mubr.bf16.mxu0 0
  %543 = vmatmul.mubr.bf16.gmra.mrb[0].mxu0 %v244
  %v544 = vpop.f32.mrb[0].mxu0
  %v545 = vadd.f32 0.0, %v544
  %v546 = vpop.f32.mrb[0].mxu0
  %v547 = vpop.f32.mrb[0].mxu0
  %v548 = vadd.f32 0.0, %v547
  %v549 = vpop.f32.mrb[0].mxu0
  %550 = vmatprep.mubr.bf16.mxu0 0
  %551 = vmatmul.mubr.bf16.gmra.mrb[0].mxu0 %v245
  %v552 = vpop.f32.mrb[0].mxu0
  %v553 = vadd.f32 0.0, %v552
  %v554 = vpop.f32.mrb[0].mxu0
  %v555 = vpop.f32.mrb[0].mxu0
  %v556 = vadd.f32 0.0, %v555
  %v557 = vpop.f32.mrb[0].mxu0
  %558 = vmatprep.mubr.bf16.mxu0 0
  %559 = vmatmul.mubr.bf16.gmra.mrb[0].mxu0 %v246
  %v560 = vpop.f32.mrb[0].mxu0
  %v561 = vadd.f32 0.0, %v560
  %v562 = vpop.f32.mrb[0].mxu0
  %v563 = vpop.f32.mrb[0].mxu0
  %v564 = vadd.f32 0.0, %v563
  %v565 = vpop.f32.mrb[0].mxu0
  %566 = vmatprep.mubr.bf16.mxu0 0
  %567 = vmatmul.mubr.bf16.gmra.mrb[0].mxu0 %v247
  %v568 = vpop.f32.mrb[0].mxu0
  %v569 = vadd.f32 0.0, %v568
  %v570 = vpop.f32.mrb[0].mxu0
  %v571 = vpop.f32.mrb[0].mxu0
  %v572 = vadd.f32 0.0, %v571
  %v573 = vpop.f32.mrb[0].mxu0
  %574 = vmatprep.mubr.bf16.mxu0 0
  %575 = vmatmul.mubr.bf16.gmra.mrb[0].mxu0 %v248
  %v576 = vpop.f32.mrb[0].mxu0
  %v577 = vadd.f32 0.0, %v576
  %v578 = vpop.f32.mrb[0].mxu0
  %v579 = vpop.f32.mrb[0].mxu0
  %v580 = vadd.f32 0.0, %v579
  %v581 = vpop.f32.mrb[0].mxu0
  %582 = vmatprep.mubr.bf16.mxu0 0
  %583 = vmatmul.mubr.bf16.gmra.mrb[0].mxu0 %v249
  %v584 = vpop.f32.mrb[0].mxu0
  %v585 = vadd.f32 0.0, %v584
  %v586 = vpop.f32.mrb[0].mxu0
  %v587 = vpop.f32.mrb[0].mxu0
  %v588 = vadd.f32 0.0, %v587
  %v589 = vpop.f32.mrb[0].mxu0
  %590 = vmatprep.mubr.bf16.mxu0 0
  %591 = vmatmul.mubr.bf16.gmra.mrb[0].mxu0 %v250
  %v592 = vpop.f32.mrb[0].mxu0
  %v593 = vadd.f32 0.0, %v592
  %v594 = vpop.f32.mrb[0].mxu0
  %v595 = vpop.f32.mrb[0].mxu0
  %v596 = vadd.f32 0.0, %v595
  %v597 = vpop.f32.mrb[0].mxu0
  %598 = vmatprep.mubr.bf16.mxu0 0
  %599 = vmatmul.mubr.bf16.gmra.mrb[0].mxu0 %v251
  %v600 = vpop.f32.mrb[0].mxu0
  %v601 = vadd.f32 0.0, %v600
  %v602 = vpop.f32.mrb[0].mxu0
  %v603 = vpop.f32.mrb[0].mxu0
  %v604 = vadd.f32 0.0, %v603
  %v605 = vpop.f32.mrb[0].mxu0
  %606 = vmatprep.mubr.bf16.mxu0 0
  %607 = vmatmul.mubr.bf16.gmra.mrb[0].mxu0 %v252
  %v608 = vpop.f32.mrb[0].mxu0
  %v609 = vadd.f32 0.0, %v608
  %v610 = vpop.f32.mrb[0].mxu0
  %v611 = vpop.f32.mrb[0].mxu0
  %v612 = vadd.f32 0.0, %v611
  %v613 = vpop.f32.mrb[0].mxu0
  %614 = vmatprep.mubr.bf16.mxu0 0
  %615 = vmatmul.mubr.bf16.gmra.mrb[0].mxu0 %v253
  %v616 = vpop.f32.mrb[0].mxu0
  %v617 = vadd.f32 0.0, %v616
  %v618 = vpop.f32.mrb[0].mxu0
  %v619 = vpop.f32.mrb[0].mxu0
  %v620 = vadd.f32 0.0, %v619
  %v621 = vpop.f32.mrb[0].mxu0
  %622 = vdwg.mxu0
  %v623 = vpack.c.bf16 %v372, %v369
  %v624 = vpack.c.bf16 %v380, %v377
  %v625 = vpack.c.bf16 %v388, %v385
  %v626 = vpack.c.bf16 %v396, %v393
  %v627 = vpack.c.bf16 %v404, %v401
  %v628 = vpack.c.bf16 %v412, %v409
  %v629 = vpack.c.bf16 %v420, %v417
  %v630 = vpack.c.bf16 %v428, %v425
  %v631 = vpack.c.bf16 %v436, %v433
  %v632 = vpack.c.bf16 %v444, %v441
  %v633 = vpack.c.bf16 %v452, %v449
  %v634 = vpack.c.bf16 %v460, %v457
  %v635 = vpack.c.bf16 %v468, %v465
  %v636 = vpack.c.bf16 %v476, %v473
  %v637 = vpack.c.bf16 %v484, %v481
  %v638 = vpack.c.bf16 %v492, %v489
  %v639 = vpack.c.bf16 %v500, %v497
  %v640 = vpack.c.bf16 %v508, %v505
  %v641 = vpack.c.bf16 %v516, %v513
  %v642 = vpack.c.bf16 %v524, %v521
  %v643 = vpack.c.bf16 %v532, %v529
  %v644 = vpack.c.bf16 %v540, %v537
  %v645 = vpack.c.bf16 %v548, %v545
  %v646 = vpack.c.bf16 %v556, %v553
  %v647 = vpack.c.bf16 %v564, %v561
  %v648 = vpack.c.bf16 %v572, %v569
  %v649 = vpack.c.bf16 %v580, %v577
  %v650 = vpack.c.bf16 %v588, %v585
  %v651 = vpack.c.bf16 %v596, %v593
  %v652 = vpack.c.bf16 %v604, %v601
  %v653 = vpack.c.bf16 %v612, %v609
  %v654 = vpack.c.bf16 %v620, %v617
  %v687 = vunpack.c.l.b16 %v623
  %v688 = vunpack.c.h.b16 %v623
  %v689 = vunpack.c.l.b16 %v624
  %v690 = vunpack.c.h.b16 %v624
  %v691 = vunpack.c.l.b16 %v625
  %v692 = vunpack.c.h.b16 %v625
  %v693 = vunpack.c.l.b16 %v626
  %v694 = vunpack.c.h.b16 %v626
  %v695 = vunpack.c.l.b16 %v627
  %v696 = vunpack.c.h.b16 %v627
  %v697 = vunpack.c.l.b16 %v628
  %v698 = vunpack.c.h.b16 %v628
  %v699 = vunpack.c.l.b16 %v629
  %v700 = vunpack.c.h.b16 %v629
  %v701 = vunpack.c.l.b16 %v630
  %v702 = vunpack.c.h.b16 %v630
  %v703 = vunpack.c.l.b16 %v631
  %v704 = vunpack.c.h.b16 %v631
  %v705 = vunpack.c.l.b16 %v632
  %v706 = vunpack.c.h.b16 %v632
  %v707 = vunpack.c.l.b16 %v633
  %v708 = vunpack.c.h.b16 %v633
  %v709 = vunpack.c.l.b16 %v634
  %v710 = vunpack.c.h.b16 %v634
  %v711 = vunpack.c.l.b16 %v635
  %v712 = vunpack.c.h.b16 %v635
  %v713 = vunpack.c.l.b16 %v636
  %v714 = vunpack.c.h.b16 %v636
  %v715 = vunpack.c.l.b16 %v637
  %v716 = vunpack.c.h.b16 %v637
  %v717 = vunpack.c.l.b16 %v638
  %v718 = vunpack.c.h.b16 %v638
  %v719 = vunpack.c.l.b16 %v639
  %v720 = vunpack.c.h.b16 %v639
  %v721 = vunpack.c.l.b16 %v640
  %v722 = vunpack.c.h.b16 %v640
  %v723 = vunpack.c.l.b16 %v641
  %v724 = vunpack.c.h.b16 %v641
  %v725 = vunpack.c.l.b16 %v642
  %v726 = vunpack.c.h.b16 %v642
  %v727 = vunpack.c.l.b16 %v643
  %v728 = vunpack.c.h.b16 %v643
  %v729 = vunpack.c.l.b16 %v644
  %v730 = vunpack.c.h.b16 %v644
  %v731 = vunpack.c.l.b16 %v645
  %v732 = vunpack.c.h.b16 %v645
  %v733 = vunpack.c.l.b16 %v646
  %v734 = vunpack.c.h.b16 %v646
  %v735 = vunpack.c.l.b16 %v647
  %v736 = vunpack.c.h.b16 %v647
  %v737 = vunpack.c.l.b16 %v648
  %v738 = vunpack.c.h.b16 %v648
  %v739 = vunpack.c.l.b16 %v649
  %v740 = vunpack.c.h.b16 %v649
  %v741 = vunpack.c.l.b16 %v650
  %v742 = vunpack.c.h.b16 %v650
  %v743 = vunpack.c.l.b16 %v651
  %v744 = vunpack.c.h.b16 %v651
  %v745 = vunpack.c.l.b16 %v652
  %v746 = vunpack.c.h.b16 %v652
  %v747 = vunpack.c.l.b16 %v653
  %v748 = vunpack.c.h.b16 %v653
  %v749 = vunpack.c.l.b16 %v654
  %v750 = vunpack.c.h.b16 %v654
  %v751 = vpack.c.b16 %v687, %v687
  %v752 = vpack.c.b16 %v688, %v688
  %v753 = vpack.c.b16 %v689, %v689
  %v754 = vpack.c.b16 %v690, %v690
  %v755 = vpack.c.b16 %v691, %v691
  %v756 = vpack.c.b16 %v692, %v692
  %v757 = vpack.c.b16 %v693, %v693
  %v758 = vpack.c.b16 %v694, %v694
  %v759 = vpack.c.b16 %v695, %v695
  %v760 = vpack.c.b16 %v696, %v696
  %v761 = vpack.c.b16 %v697, %v697
  %v762 = vpack.c.b16 %v698, %v698
  %v763 = vpack.c.b16 %v699, %v699
  %v764 = vpack.c.b16 %v700, %v700
  %v765 = vpack.c.b16 %v701, %v701
  %v766 = vpack.c.b16 %v702, %v702
  %v767 = vpack.c.b16 %v703, %v703
  %v768 = vpack.c.b16 %v704, %v704
  %v769 = vpack.c.b16 %v705, %v705
  %v770 = vpack.c.b16 %v706, %v706
  %v771 = vpack.c.b16 %v707, %v707
  %v772 = vpack.c.b16 %v708, %v708
  %v773 = vpack.c.b16 %v709, %v709
  %v774 = vpack.c.b16 %v710, %v710
  %v775 = vpack.c.b16 %v711, %v711
  %v776 = vpack.c.b16 %v712, %v712
  %v777 = vpack.c.b16 %v713, %v713
  %v778 = vpack.c.b16 %v714, %v714
  %v779 = vpack.c.b16 %v715, %v715
  %v780 = vpack.c.b16 %v716, %v716
  %v781 = vpack.c.b16 %v717, %v717
  %v782 = vpack.c.b16 %v718, %v718
  %v783 = vpack.c.b16 %v719, %v719
  %v784 = vpack.c.b16 %v720, %v720
  %v785 = vpack.c.b16 %v721, %v721
  %v786 = vpack.c.b16 %v722, %v722
  %v787 = vpack.c.b16 %v723, %v723
  %v788 = vpack.c.b16 %v724, %v724
  %v789 = vpack.c.b16 %v725, %v725
  %v790 = vpack.c.b16 %v726, %v726
  %v791 = vpack.c.b16 %v727, %v727
  %v792 = vpack.c.b16 %v728, %v728
  %v793 = vpack.c.b16 %v729, %v729
  %v794 = vpack.c.b16 %v730, %v730
  %v795 = vpack.c.b16 %v731, %v731
  %v796 = vpack.c.b16 %v732, %v732
  %v797 = vpack.c.b16 %v733, %v733
  %v798 = vpack.c.b16 %v734, %v734
  %v799 = vpack.c.b16 %v735, %v735
  %v800 = vpack.c.b16 %v736, %v736
  %v801 = vpack.c.b16 %v737, %v737
  %v802 = vpack.c.b16 %v738, %v738
  %v803 = vpack.c.b16 %v739, %v739
  %v804 = vpack.c.b16 %v740, %v740
  %v805 = vpack.c.b16 %v741, %v741
  %v806 = vpack.c.b16 %v742, %v742
  %v807 = vpack.c.b16 %v743, %v743
  %v808 = vpack.c.b16 %v744, %v744
  %v809 = vpack.c.b16 %v745, %v745
  %v810 = vpack.c.b16 %v746, %v746
  %v811 = vpack.c.b16 %v747, %v747
  %v812 = vpack.c.b16 %v748, %v748
  %v813 = vpack.c.b16 %v749, %v749
  %v814 = vpack.c.b16 %v750, %v750
  %879 = vst [vmem:[%s2] sm:$0xf] %v751
  %880 = vst [vmem:[%s2 + $0x4] sm:$0xf] %v752
  %881 = vst [vmem:[%s2 + $0x8] sm:$0xf] %v753
  %882 = vst [vmem:[%s2 + $0xc] sm:$0xf] %v754
  %883 = vst [vmem:[%s2 + $0x10] sm:$0xf] %v755
  %884 = vst [vmem:[%s2 + $0x14] sm:$0xf] %v756
  %885 = vst [vmem:[%s2 + $0x18] sm:$0xf] %v757
  %886 = vst [vmem:[%s2 + $0x1c] sm:$0xf] %v758
  %887 = vst [vmem:[%s2 + $0x20] sm:$0xf] %v759
  %888 = vst [vmem:[%s2 + $0x24] sm:$0xf] %v760
  %889 = vst [vmem:[%s2 + $0x28] sm:$0xf] %v761
  %890 = vst [vmem:[%s2 + $0x2c] sm:$0xf] %v762
  %891 = vst [vmem:[%s2 + $0x30] sm:$0xf] %v763
  %892 = vst [vmem:[%s2 + $0x34] sm:$0xf] %v764
  %893 = vst [vmem:[%s2 + $0x38] sm:$0xf] %v765
  %894 = vst [vmem:[%s2 + $0x3c] sm:$0xf] %v766
  %895 = vst [vmem:[%s2 + $0x40] sm:$0xf] %v767
  %896 = vst [vmem:[%s2 + $0x44] sm:$0xf] %v768
  %897 = vst [vmem:[%s2 + $0x48] sm:$0xf] %v769
  %898 = vst [vmem:[%s2 + $0x4c] sm:$0xf] %v770
  %899 = vst [vmem:[%s2 + $0x50] sm:$0xf] %v771
  %900 = vst [vmem:[%s2 + $0x54] sm:$0xf] %v772
  %901 = vst [vmem:[%s2 + $0x58] sm:$0xf] %v773
  %902 = vst [vmem:[%s2 + $0x5c] sm:$0xf] %v774
  %903 = vst [vmem:[%s2 + $0x60] sm:$0xf] %v775
  %904 = vst [vmem:[%s2 + $0x64] sm:$0xf] %v776
  %905 = vst [vmem:[%s2 + $0x68] sm:$0xf] %v777
  %906 = vst [vmem:[%s2 + $0x6c] sm:$0xf] %v778
  %907 = vst [vmem:[%s2 + $0x70] sm:$0xf] %v779
  %908 = vst [vmem:[%s2 + $0x74] sm:$0xf] %v780
  %909 = vst [vmem:[%s2 + $0x78] sm:$0xf] %v781
  %910 = vst [vmem:[%s2 + $0x7c] sm:$0xf] %v782
  %911 = vst [vmem:[%s2 + $0x80] sm:$0xf] %v783
  %912 = vst [vmem:[%s2 + $0x84] sm:$0xf] %v784
  %913 = vst [vmem:[%s2 + $0x88] sm:$0xf] %v785
  %914 = vst [vmem:[%s2 + $0x8c] sm:$0xf] %v786
  %915 = vst [vmem:[%s2 + $0x90] sm:$0xf] %v787
  %916 = vst [vmem:[%s2 + $0x94] sm:$0xf] %v788
  %917 = vst [vmem:[%s2 + $0x98] sm:$0xf] %v789
  %918 = vst [vmem:[%s2 + $0x9c] sm:$0xf] %v790
  %919 = vst [vmem:[%s2 + $0xa0] sm:$0xf] %v791
  %920 = vst [vmem:[%s2 + $0xa4] sm:$0xf] %v792
  %921 = vst [vmem:[%s2 + $0xa8] sm:$0xf] %v793
  %922 = vst [vmem:[%s2 + $0xac] sm:$0xf] %v794
  %923 = vst [vmem:[%s2 + $0xb0] sm:$0xf] %v795
  %924 = vst [vmem:[%s2 + $0xb4] sm:$0xf] %v796
  %925 = vst [vmem:[%s2 + $0xb8] sm:$0xf] %v797
  %926 = vst [vmem:[%s2 + $0xbc] sm:$0xf] %v798
  %927 = vst [vmem:[%s2 + $0xc0] sm:$0xf] %v799
  %928 = vst [vmem:[%s2 + $0xc4] sm:$0xf] %v800
  %929 = vst [vmem:[%s2 + $0xc8] sm:$0xf] %v801
  %930 = vst [vmem:[%s2 + $0xcc] sm:$0xf] %v802
  %931 = vst [vmem:[%s2 + $0xd0] sm:$0xf] %v803
  %932 = vst [vmem:[%s2 + $0xd4] sm:$0xf] %v804
  %933 = vst [vmem:[%s2 + $0xd8] sm:$0xf] %v805
  %934 = vst [vmem:[%s2 + $0xdc] sm:$0xf] %v806
  %935 = vst [vmem:[%s2 + $0xe0] sm:$0xf] %v807
  %936 = vst [vmem:[%s2 + $0xe4] sm:$0xf] %v808
  %937 = vst [vmem:[%s2 + $0xe8] sm:$0xf] %v809
  %938 = vst [vmem:[%s2 + $0xec] sm:$0xf] %v810
  %939 = vst [vmem:[%s2 + $0xf0] sm:$0xf] %v811
  %940 = vst [vmem:[%s2 + $0xf4] sm:$0xf] %v812
  %941 = vst [vmem:[%s2 + $0xf8] sm:$0xf] %v813
  %942 = vst [vmem:[%s2 + $0xfc] sm:$0xf] %v814
  %v943 = vadd.f32 %v369, %v372
  %v944 = vadd.f32 %v943, %v377
  %v945 = vadd.f32 %v944, %v380
  %v946 = vadd.f32 %v945, %v385
  %v947 = vadd.f32 %v946, %v388
  %v948 = vadd.f32 %v947, %v393
  %v949 = vadd.f32 %v948, %v396
  %v950 = vadd.f32 %v949, %v401
  %v951 = vadd.f32 %v950, %v404
  %v952 = vadd.f32 %v951, %v409
  %v953 = vadd.f32 %v952, %v412
  %v954 = vadd.f32 %v953, %v417
  %v955 = vadd.f32 %v954, %v420
  %v956 = vadd.f32 %v955, %v425
  %v957 = vadd.f32 %v956, %v428
  %v958 = vadd.f32 %v957, %v433
  %v959 = vadd.f32 %v958, %v436
  %v960 = vadd.f32 %v959, %v441
  %v961 = vadd.f32 %v960, %v444
  %v962 = vadd.f32 %v961, %v449
  %v963 = vadd.f32 %v962, %v452
  %v964 = vadd.f32 %v963, %v457
  %v965 = vadd.f32 %v964, %v460
  %v966 = vadd.f32 %v965, %v465
  %v967 = vadd.f32 %v966, %v468
  %v968 = vadd.f32 %v967, %v473
  %v969 = vadd.f32 %v968, %v476
  %v970 = vadd.f32 %v969, %v481
  %v971 = vadd.f32 %v970, %v484
  %v972 = vadd.f32 %v971, %v489
  %v973 = vadd.f32 %v972, %v492
  %v974 = vadd.f32 %v973, %v497
  %v975 = vadd.f32 %v974, %v500
  %v976 = vadd.f32 %v975, %v505
  %v977 = vadd.f32 %v976, %v508
  %v978 = vadd.f32 %v977, %v513
  %v979 = vadd.f32 %v978, %v516
  %v980 = vadd.f32 %v979, %v521
  %v981 = vadd.f32 %v980, %v524
  %v982 = vadd.f32 %v981, %v529
  %v983 = vadd.f32 %v982, %v532
  %v984 = vadd.f32 %v983, %v537
  %v985 = vadd.f32 %v984, %v540
  %v986 = vadd.f32 %v985, %v545
  %v987 = vadd.f32 %v986, %v548
  %v988 = vadd.f32 %v987, %v553
  %v989 = vadd.f32 %v988, %v556
  %v990 = vadd.f32 %v989, %v561
  %v991 = vadd.f32 %v990, %v564
  %v992 = vadd.f32 %v991, %v569
  %v993 = vadd.f32 %v992, %v572
  %v994 = vadd.f32 %v993, %v577
  %v995 = vadd.f32 %v994, %v580
  %v996 = vadd.f32 %v995, %v585
  %v997 = vadd.f32 %v996, %v588
  %v998 = vadd.f32 %v997, %v593
  %v999 = vadd.f32 %v998, %v596
  %v1000 = vadd.f32 %v999, %v601
  %v1001 = vadd.f32 %v1000, %v604
  %v1002 = vadd.f32 %v1001, %v609
  %v1003 = vadd.f32 %v1002, %v612
  %v1004 = vadd.f32 %v1003, %v617
  %v1005 = vadd.f32 %v1004, %v620
  %v1006 = vrot.slane %v1005, 4
  %v1007 = vadd.f32 %v1005, %v1006
  %v1008 = vrot.slane %v1007, 2
  %v1009 = vadd.f32 %v1007, %v1008
  %v1010 = vrot.slane %v1009, 1
  %v1011 = vadd.f32 %v1009, %v1010
  %v1012 = vmul.f32 %v369, %v369
  %v1013 = vmul.f32 %v372, %v372
  %v1014 = vmul.f32 %v377, %v377
  %v1015 = vmul.f32 %v380, %v380
  %v1016 = vmul.f32 %v385, %v385
  %v1017 = vmul.f32 %v388, %v388
  %v1018 = vmul.f32 %v393, %v393
  %v1019 = vmul.f32 %v396, %v396
  %v1020 = vmul.f32 %v401, %v401
  %v1021 = vmul.f32 %v404, %v404
  %v1022 = vmul.f32 %v409, %v409
  %v1023 = vmul.f32 %v412, %v412
  %v1024 = vmul.f32 %v417, %v417
  %v1025 = vmul.f32 %v420, %v420
  %v1026 = vmul.f32 %v425, %v425
  %v1027 = vmul.f32 %v428, %v428
  %v1028 = vmul.f32 %v433, %v433
  %v1029 = vmul.f32 %v436, %v436
  %v1030 = vmul.f32 %v441, %v441
  %v1031 = vmul.f32 %v444, %v444
  %v1032 = vmul.f32 %v449, %v449
  %v1033 = vmul.f32 %v452, %v452
  %v1034 = vmul.f32 %v457, %v457
  %v1035 = vmul.f32 %v460, %v460
  %v1036 = vmul.f32 %v465, %v465
  %v1037 = vmul.f32 %v468, %v468
  %v1038 = vmul.f32 %v473, %v473
  %v1039 = vmul.f32 %v476, %v476
  %v1040 = vmul.f32 %v481, %v481
  %v1041 = vmul.f32 %v484, %v484
  %v1042 = vmul.f32 %v489, %v489
  %v1043 = vmul.f32 %v492, %v492
  %v1044 = vmul.f32 %v497, %v497
  %v1045 = vmul.f32 %v500, %v500
  %v1046 = vmul.f32 %v505, %v505
  %v1047 = vmul.f32 %v508, %v508
  %v1048 = vmul.f32 %v513, %v513
  %v1049 = vmul.f32 %v516, %v516
  %v1050 = vmul.f32 %v521, %v521
  %v1051 = vmul.f32 %v524, %v524
  %v1052 = vmul.f32 %v529, %v529
  %v1053 = vmul.f32 %v532, %v532
  %v1054 = vmul.f32 %v537, %v537
  %v1055 = vmul.f32 %v540, %v540
  %v1056 = vmul.f32 %v545, %v545
  %v1057 = vmul.f32 %v548, %v548
  %v1058 = vmul.f32 %v553, %v553
  %v1059 = vmul.f32 %v556, %v556
  %v1060 = vmul.f32 %v561, %v561
  %v1061 = vmul.f32 %v564, %v564
  %v1062 = vmul.f32 %v569, %v569
  %v1063 = vmul.f32 %v572, %v572
  %v1064 = vmul.f32 %v577, %v577
  %v1065 = vmul.f32 %v580, %v580
  %v1066 = vmul.f32 %v585, %v585
  %v1067 = vmul.f32 %v588, %v588
  %v1068 = vmul.f32 %v593, %v593
  %v1069 = vmul.f32 %v596, %v596
  %v1070 = vmul.f32 %v601, %v601
  %v1071 = vmul.f32 %v604, %v604
  %v1072 = vmul.f32 %v609, %v609
  %v1073 = vmul.f32 %v612, %v612
  %v1074 = vmul.f32 %v617, %v617
  %v1075 = vmul.f32 %v620, %v620
  %v1076 = vadd.f32 %v1012, %v1013
  %v1077 = vadd.f32 %v1076, %v1014
  %v1078 = vadd.f32 %v1077, %v1015
  %v1079 = vadd.f32 %v1078, %v1016
  %v1080 = vadd.f32 %v1079, %v1017
  %v1081 = vadd.f32 %v1080, %v1018
  %v1082 = vadd.f32 %v1081, %v1019
  %v1083 = vadd.f32 %v1082, %v1020
  %v1084 = vadd.f32 %v1083, %v1021
  %v1085 = vadd.f32 %v1084, %v1022
  %v1086 = vadd.f32 %v1085, %v1023
  %v1087 = vadd.f32 %v1086, %v1024
  %v1088 = vadd.f32 %v1087, %v1025
  %v1089 = vadd.f32 %v1088, %v1026
  %v1090 = vadd.f32 %v1089, %v1027
  %v1091 = vadd.f32 %v1090, %v1028
  %v1092 = vadd.f32 %v1091, %v1029
  %v1093 = vadd.f32 %v1092, %v1030
  %v1094 = vadd.f32 %v1093, %v1031
  %v1095 = vadd.f32 %v1094, %v1032
  %v1096 = vadd.f32 %v1095, %v1033
  %v1097 = vadd.f32 %v1096, %v1034
  %v1098 = vadd.f32 %v1097, %v1035
  %v1099 = vadd.f32 %v1098, %v1036
  %v1100 = vadd.f32 %v1099, %v1037
  %v1101 = vadd.f32 %v1100, %v1038
  %v1102 = vadd.f32 %v1101, %v1039
  %v1103 = vadd.f32 %v1102, %v1040
  %v1104 = vadd.f32 %v1103, %v1041
  %v1105 = vadd.f32 %v1104, %v1042
  %v1106 = vadd.f32 %v1105, %v1043
  %v1107 = vadd.f32 %v1106, %v1044
  %v1108 = vadd.f32 %v1107, %v1045
  %v1109 = vadd.f32 %v1108, %v1046
  %v1110 = vadd.f32 %v1109, %v1047
  %v1111 = vadd.f32 %v1110, %v1048
  %v1112 = vadd.f32 %v1111, %v1049
  %v1113 = vadd.f32 %v1112, %v1050
  %v1114 = vadd.f32 %v1113, %v1051
  %v1115 = vadd.f32 %v1114, %v1052
  %v1116 = vadd.f32 %v1115, %v1053
  %v1117 = vadd.f32 %v1116, %v1054
  %v1118 = vadd.f32 %v1117, %v1055
  %v1119 = vadd.f32 %v1118, %v1056
  %v1120 = vadd.f32 %v1119, %v1057
  %v1121 = vadd.f32 %v1120, %v1058
  %v1122 = vadd.f32 %v1121, %v1059
  %v1123 = vadd.f32 %v1122, %v1060
  %v1124 = vadd.f32 %v1123, %v1061
  %v1125 = vadd.f32 %v1124, %v1062
  %v1126 = vadd.f32 %v1125, %v1063
  %v1127 = vadd.f32 %v1126, %v1064
  %v1128 = vadd.f32 %v1127, %v1065
  %v1129 = vadd.f32 %v1128, %v1066
  %v1130 = vadd.f32 %v1129, %v1067
  %v1131 = vadd.f32 %v1130, %v1068
  %v1132 = vadd.f32 %v1131, %v1069
  %v1133 = vadd.f32 %v1132, %v1070
  %v1134 = vadd.f32 %v1133, %v1071
  %v1135 = vadd.f32 %v1134, %v1072
  %v1136 = vadd.f32 %v1135, %v1073
  %v1137 = vadd.f32 %v1136, %v1074
  %v1138 = vadd.f32 %v1137, %v1075
  %v1139 = vrot.slane %v1138, 4
  %v1140 = vadd.f32 %v1138, %v1139
  %v1141 = vrot.slane %v1140, 2
  %v1142 = vadd.f32 %v1140, %v1141
  %v1143 = vrot.slane %v1142, 1
  %v1144 = vadd.f32 %v1142, %v1143
  %vm1145 = vcmask 1040384
  %v1146 = vsel %vm1145, %v1011, %v1144
  %1147 = vst [vmem:[%s3] sm:$0x3] %v1146
  // Predicated region
  $region10: #{conv_forward.2} parent=0 // pred_check
    _
  $region11: #{conv_forward.2} parent=0 // pred_check_branch
    %1149 = sbr.rel (0) target = $region13
  $region12: #{conv_forward.2} parent=0 // pred_region
    _
  $region13: #{conv_forward.2} parent=0 // pred_fallthru
    _
  // Predicated region
  $region14: #{conv_forward.2} parent=0 // pred_check
    _
  $region15: #{conv_forward.2} parent=0 // pred_check_branch
    %1151 = sbr.rel (0) target = $region17
  $region16: #{conv_forward.2} parent=0 // pred_region
    _
  $region17: #{conv_forward.2} parent=0 // pred_fallthru
    _
  // Predicated region
  $region18: #{conv_forward.2} parent=0 // pred_check
    _
  $region19: #{conv_forward.2} parent=0 // pred_check_branch
    %1153 = sbr.rel (0) target = $region21
  $region20: #{conv_forward.2} parent=0 // pred_region
    _
  $region21: #{conv_forward.2} parent=0 // pred_fallthru
    _
  // Predicated region
  $region22: #{conv_forward.2} parent=0 // pred_check
    _
  $region23: #{conv_forward.2} parent=0 // pred_check_branch
    %1155 = sbr.rel (0) target = $region25
  $region24: #{conv_forward.2} parent=0 // pred_region
    _
  $region25: #{conv_forward.2} parent=0 // pred_fallthru
    _

</llo_original>
